<compile_context>
chip_gen: v5e
topology: v5e:2x2
jax: 0.10.0
libtpu: 0.0.40
codegen_flags: <defaults>
</compile_context>

<pallas_src>
import jax
import jax.numpy as jnp
from jax import lax
from jax.experimental import pallas as pl
from jax.experimental.pallas import tpu as pltpu

BN_EPS = 1e-5


# ----------------------------------------------------------------------------
# Fused kernel: entire SignNetGNN_S forward in one pallas_call
# ----------------------------------------------------------------------------
def make_fused_kernel(nl_signnet, nl_gnn, k, n, n_hid):
    kn = float(k * n)
    nf = float(n)

    def kernel(eps_ref, x_sign_ref, adj_blk_ref, node_x_ref, phi_w0_ref,
               sq_w_ref, phi_out_w_ref, bn_ref, enc_w_ref, merge_w_ref,
               out_wt_ref, out_ref):

        def bn(h, idx, count, relu):
            """Training-mode BatchNorm over rows (two-pass var), affine folded
            into one broadcast scale; optional ReLU. All fp32."""
            gamma = bn_ref[2 * idx:2 * idx + 1, :]
            beta = bn_ref[2 * idx + 1:2 * idx + 2, :]
            mean = jnp.sum(h, axis=0, keepdims=True) * (1.0 / count)
            diff = h - mean
            var = jnp.sum(diff * diff, axis=0, keepdims=True) * (1.0 / count)
            scale = lax.rsqrt(var + BN_EPS) * gamma          # (1, n_hid) row only
            y = diff * scale + beta
            return jnp.maximum(y, 0.0) if relu else y

        def mxu(a_f32, b_bf16):
            """bf16 MXU matmul with fp32 accumulation (weights already bf16)."""
            return jnp.dot(a_f32.astype(jnp.bfloat16), b_bf16,
                           preferred_element_type=jnp.float32)

        # -------- SignNet phi = GNN3d(1, n_hid, nl_signnet, skipc=True) --------
        # k channels flattened into the MXU M dimension via block-diag adjacency.
        A = adj_blk_ref[...]                                     # (k*n, k*n) bf16

        # Layer 0 (d_in == 1): Linear folded into a VPU outer product
        # ((1+eps)x + Ax) @ W == (1+eps)(x*w) + A(x*w)  -> no K=1 MXU matmul.
        x = x_sign_ref[...] * phi_w0_ref[...]                    # (k*n, n_hid)
        h = (1.0 + eps_ref[0]) * x + jnp.dot(
            A, x.astype(jnp.bfloat16), preferred_element_type=jnp.float32)
        x = bn(h, 0, kn, relu=True)

        # skip-concat + output_encoder accumulated in-loop (no skips list, no concat):
        #   concat(skips, -1) @ W_out == sum_l skips[l] @ W_out[l*n_hid:(l+1)*n_hid]
        h_out = mxu(x, phi_out_w_ref[0:n_hid, :])

        for l in range(1, nl_signnet):
            agg = jnp.dot(A, x.astype(jnp.bfloat16), preferred_element_type=jnp.float32)
            pre = (1.0 + eps_ref[l]) * x + agg
            h = mxu(pre, sq_w_ref[l - 1])
            x = bn(h, l, kn, relu=True)
            h_out = h_out + mxu(x, phi_out_w_ref[l * n_hid:(l + 1) * n_hid, :])

        y = bn(h_out, nl_signnet, kn, relu=False)                # output_norm

        # Mean over the k eigenvector channels (sign-invariant pos): pure VPU adds
        # over static sublane-aligned slices (replaces the old fp32 mean-matrix matmul).
        pos = y[0:n, :]
        for c in range(1, k):
            pos = pos + y[c * n:(c + 1) * n, :]
        pos = pos * (1.0 / k)                                    # (n, n_hid)

        # -------- downstream GIN stack ------------------------------------------
        # TODO(synk): masked_layers.* / downstream GNN class bodies are not in the
        #             reference snippet; reconstructed as node encoder -> [x, pos]
        #             merge -> GIN(Linear)+BN+ReLU layers -> mean pool -> linear,
        #             with edge features dropped ("assume no edge feature").
        x_enc = mxu(node_x_ref[...], enc_w_ref[...])             # (n, n_hid)
        xn = mxu(x_enc, merge_w_ref[0:n_hid, :]) + mxu(pos, merge_w_ref[n_hid:2 * n_hid, :])

        A2 = adj_blk_ref[0:n, 0:n]                               # 1st diag block == adj
        for l in range(nl_gnn):
            agg = jnp.dot(A2, xn.astype(jnp.bfloat16), preferred_element_type=jnp.float32)
            pre = (1.0 + eps_ref[nl_signnet + l]) * xn + agg
            h = mxu(pre, sq_w_ref[nl_signnet - 1 + l])
            xn = bn(h, nl_signnet + 1 + l, nf, relu=True)

        # Global mean pool + output projection on the VPU (no M=1 fp32 MXU matmul):
        # out_w is pre-transposed to (n_out, n_hid); result is a (n_out, 1) column.
        pooled = jnp.sum(xn, axis=0, keepdims=True) * (1.0 / nf)  # (1, n_hid)
        out_ref[...] = jnp.sum(out_wt_ref[...] * pooled, axis=-1, keepdims=True)

    return kernel


# ----------------------------------------------------------------------------
# One-time prep (off the per-call path): graph constants + packed parameters
# ----------------------------------------------------------------------------
def prepare_graph(adj, k):
    """Block-diagonal adjacency I_k (x) adj (0/1 entries -> bf16 is lossless).
    Depends only on the graph; build once and reuse across forwards."""
    return jnp.kron(jnp.eye(k, dtype=jnp.float32),
                    adj.astype(jnp.float32)).astype(jnp.bfloat16)


def pack_params(p):
    """Consolidate ~25 per-layer tensors into a few stacked kernel operands and
    pre-cast matmul weights to bf16 (cuts DMA-descriptor / arg-handling overhead)."""
    n_hid = p["phi_out_w"].shape[1]

    gammas = list(p["phi_gamma"]) + [p["phi_out_gamma"]] + list(p["gnn_gamma"])
    betas = list(p["phi_beta"]) + [p["phi_out_beta"]] + list(p["gnn_beta"])
    rows = []
    for g, b in zip(gammas, betas):
        rows += [g.reshape(1, n_hid), b.reshape(1, n_hid)]
    bn_gb = jnp.concatenate(rows, axis=0).astype(jnp.float32)    # (2*(nl_s+1+nl_g), n_hid)

    sq_w = jnp.stack(list(p["phi_w"][1:]) + list(p["gnn_w"])).astype(jnp.bfloat16)

    return {
        "eps": jnp.concatenate(list(p["phi_eps"]) + list(p["gnn_eps"])).astype(jnp.float32),
        "phi_w0": p["phi_w"][0].astype(jnp.float32),             # (1, n_hid): VPU outer prod
        "sq_w": sq_w,                                            # (nl_s-1+nl_g, n_hid, n_hid)
        "phi_out_w": p["phi_out_w"].astype(jnp.bfloat16),        # (nl_s*n_hid, n_hid)
        "bn_gb": bn_gb,                                          # interleaved gamma/beta rows
        "enc_w": p["gnn_enc_w"].astype(jnp.bfloat16),
        "merge_w": p["gnn_merge_w"].astype(jnp.bfloat16),
        "out_w_t": p["gnn_out_w"].T.astype(jnp.float32),         # (n_out, n_hid): VPU path
    }


# ----------------------------------------------------------------------------
# Wrapper: single gridless pallas_call (everything fits VMEM at these sizes)
# ----------------------------------------------------------------------------
def signnet_gnn_s_forward(packed, node_x, rand, adj_blk):
    n, k, _ = rand.shape
    n_hid = packed["phi_out_w"].shape[1]
    nl_signnet = packed["phi_out_w"].shape[0] // n_hid
    nl_gnn = packed["sq_w"].shape[0] - (nl_signnet - 1)
    n_out = packed["out_w_t"].shape[0]

    # (n, k, 1) -> (k, n, 1) -> (k*n, 1): row index = channel*n + node
    x_sign = jnp.transpose(rand, (1, 0, 2)).reshape(k * n, 1).astype(jnp.float32)

    inputs = [packed["eps"], x_sign, adj_blk, node_x,
              packed["phi_w0"], packed["sq_w"], packed["phi_out_w"], packed["bn_gb"],
              packed["enc_w"], packed["merge_w"], packed["out_w_t"]]

    smem = pl.BlockSpec(memory_space=pltpu.MemorySpace.SMEM)
    vmem = pl.BlockSpec(memory_space=pltpu.MemorySpace.VMEM)

    kernel = make_fused_kernel(nl_signnet, nl_gnn, k, n, n_hid)
    out_col = pl.pallas_call(
        kernel,
        in_specs=[smem] + [vmem] * (len(inputs) - 1),
        out_specs=pl.BlockSpec(memory_space=pltpu.MemorySpace.VMEM),
        out_shape=jax.ShapeDtypeStruct((n_out, 1), jnp.float32),
    )(*inputs)
    return out_col.reshape(1, n_out)


# ----------------------------------------------------------------------------
# Deterministic parameter init (weights stored as (in, out), Linear(bias=False))
# ----------------------------------------------------------------------------
def init_params(key, node_feat, n_hid, n_out, nl_signnet, nl_gnn):
    ks = iter(jax.random.split(key, 64))

    def lin(shape, scale=0.1):
        return scale * jax.random.normal(next(ks), shape, jnp.float32)

    p = {}
    p["phi_w"] = [lin((1 if l == 0 else n_hid, n_hid)) for l in range(nl_signnet)]
    p["phi_eps"] = [jnp.zeros((1,), jnp.float32) for _ in range(nl_signnet)]
    p["phi_gamma"] = [jnp.ones((1, n_hid), jnp.float32) for _ in range(nl_signnet)]
    p["phi_beta"] = [jnp.zeros((1, n_hid), jnp.float32) for _ in range(nl_signnet)]
    p["phi_out_w"] = lin((nl_signnet * n_hid, n_hid))
    p["phi_out_gamma"] = jnp.ones((1, n_hid), jnp.float32)
    p["phi_out_beta"] = jnp.zeros((1, n_hid), jnp.float32)

    p["gnn_enc_w"] = lin((node_feat, n_hid))
    p["gnn_merge_w"] = lin((2 * n_hid, n_hid))
    p["gnn_w"] = [lin((n_hid, n_hid)) for _ in range(nl_gnn)]
    p["gnn_eps"] = [jnp.zeros((1,), jnp.float32) for _ in range(nl_gnn)]
    p["gnn_gamma"] = [jnp.ones((1, n_hid), jnp.float32) for _ in range(nl_gnn)]
    p["gnn_beta"] = [jnp.zeros((1, n_hid), jnp.float32) for _ in range(nl_gnn)]
    p["gnn_out_w"] = lin((n_hid, n_out))
    return p


# ----------------------------------------------------------------------------
# Pure-JAX fp32 reference (same math, no bf16) for a loose sanity check
# ----------------------------------------------------------------------------
def reference_forward(params, node_x, rand, adj):
    n, k, _ = rand.shape
    nl_signnet = len(params["phi_w"])
    nl_gnn = len(params["gnn_w"])
    n_hid = params["phi_out_w"].shape[1]

    def bnorm(h, gamma, beta):
        mean = h.mean(axis=0, keepdims=True)
        var = ((h - mean) ** 2).mean(axis=0, keepdims=True)
        return (h - mean) / jnp.sqrt(var + BN_EPS) * gamma + beta

    x = jnp.transpose(rand, (1, 0, 2)).reshape(k * n, 1)
    A = jnp.kron(jnp.eye(k, dtype=jnp.float32), adj)
    skips = []
    for l in range(nl_signnet):
        pre = (1.0 + params["phi_eps"][l][0]) * x + A @ x
        h = pre @ params["phi_w"][l]
        x = jax.nn.relu(bnorm(h, params["phi_gamma"][l], params["phi_beta"][l]))
        skips.append(x)
    h = jnp.concatenate(skips, axis=-1) @ params["phi_out_w"]
    y = bnorm(h, params["phi_out_gamma"], params["phi_out_beta"])
    pos = y.reshape(k, n, n_hid).mean(axis=0)

    x0 = node_x @ params["gnn_enc_w"]
    xn = jnp.concatenate([x0, pos], axis=-1) @ params["gnn_merge_w"]
    for l in range(nl_gnn):
        pre = (1.0 + params["gnn_eps"][l][0]) * xn + adj @ xn
        h = pre @ params["gnn_w"][l]
        xn = jax.nn.relu(bnorm(h, params["gnn_gamma"][l], params["gnn_beta"][l]))
    pooled = xn.mean(axis=0, keepdims=True)
    return pooled @ params["gnn_out_w"]


if __name__ == "__main__":
    key = jax.random.PRNGKey(0)
    n_nodes, k_eig = 16, 8          # k*n = 128 MXU rows
    node_feat, edge_feat = 4, 4     # edge features unused ("assume no edge feature")
    n_hid, n_out = 32, 8
    nl_signnet, nl_gnn = 3, 2
    n_edges = 48

    keys = jax.random.split(key, 8)
    src = jax.random.randint(keys[0], (n_edges,), 0, n_nodes)
    dst = jax.random.randint(keys[1], (n_edges,), 0, n_nodes)
    # Dense adjacency for GIN sum-aggregation: agg[i] = sum_{edge (j->i)} x[j]
    adj = jnp.zeros((n_nodes, n_nodes), jnp.float32).at[dst, src].add(1.0)

    node_x = jax.random.normal(keys[2], (n_nodes, node_feat), jnp.float32)  # data.x
    rand = jax.random.normal(keys[3], (n_nodes, k_eig, 1), jnp.float32)     # data "rand"

    params = init_params(keys[4], node_feat, n_hid, n_out, nl_signnet, nl_gnn)
    packed = pack_params(params)           # once, off the per-call path
    adj_blk = prepare_graph(adj, k_eig)    # once per graph, off the per-call path

    fwd = jax.jit(signnet_gnn_s_forward)
    out = fwd(packed, node_x, rand, adj_blk)
    jax.block_until_ready(out)
    assert out.shape == (1, n_out)
    assert bool(jnp.all(jnp.isfinite(out)))

    # Loose bf16-vs-fp32 sanity check against the pure-JAX reference.
    ref = reference_forward(params, node_x, rand, adj)
    err = float(jnp.max(jnp.abs(out - ref)))
    assert err < 1e-1, f"kernel/reference mismatch: max abs err {err}"

    print("KERNEL_OK")
</pallas_src>

<mosaic_0001>
module attributes {stable_mosaic.version = 11 : i64} {
  func.func @kernel(%arg0: memref<5xf32, #tpu.memory_space<smem>>, %arg1: memref<128x1xf32, #tpu.memory_space<vmem>>, %arg2: memref<128x128xbf16, #tpu.memory_space<vmem>>, %arg3: memref<16x4xf32, #tpu.memory_space<vmem>>, %arg4: memref<1x32xf32, #tpu.memory_space<vmem>>, %arg5: memref<4x32x32xbf16, #tpu.memory_space<vmem>>, %arg6: memref<96x32xbf16, #tpu.memory_space<vmem>>, %arg7: memref<12x32xf32, #tpu.memory_space<vmem>>, %arg8: memref<4x32xbf16, #tpu.memory_space<vmem>>, %arg9: memref<64x32xbf16, #tpu.memory_space<vmem>>, %arg10: memref<8x32xf32, #tpu.memory_space<vmem>>, %arg11: memref<8x1xf32, #tpu.memory_space<vmem>>) attributes {dimension_semantics = [], scalar_prefetch = 0 : i64, scratch_operands = 0 : i64, tpu.core_type = #tpu.core_type<tc>} {
    %c0 = arith.constant 0 : index
    %c0_0 = arith.constant 0 : index
    %0 = vector.load %arg2[%c0, %c0_0] : memref<128x128xbf16, #tpu.memory_space<vmem>>, vector<128x128xbf16>
    %c0_1 = arith.constant 0 : index
    %c0_2 = arith.constant 0 : index
    %1 = vector.load %arg1[%c0_1, %c0_2] : memref<128x1xf32, #tpu.memory_space<vmem>>, vector<128x1xf32>
    %c0_3 = arith.constant 0 : index
    %c0_4 = arith.constant 0 : index
    %2 = vector.load %arg4[%c0_3, %c0_4] : memref<1x32xf32, #tpu.memory_space<vmem>>, vector<1x32xf32>
    %3 = vector.broadcast %1 : vector<128x1xf32> to vector<128x32xf32>
    %4 = vector.broadcast %2 : vector<1x32xf32> to vector<128x32xf32>
    %5 = arith.mulf %3, %4 : vector<128x32xf32>
    %c0_5 = arith.constant 0 : index
    %6 = memref.load %arg0[%c0_5] : memref<5xf32, #tpu.memory_space<smem>>
    %cst = arith.constant 1.000000e+00 : f32
    %7 = arith.addf %cst, %6 : f32
    %8 = vector.broadcast %7 : f32 to vector<128x32xf32>
    %9 = arith.mulf %8, %5 : vector<128x32xf32>
    %10 = arith.truncf %5 : vector<128x32xf32> to vector<128x32xbf16>
    %cst_6 = arith.constant dense<0.000000e+00> : vector<128x32xf32>
    %11 = tpu.matmul %0, %10, %cst_6 {dimension_numbers = #tpu.dot_dimension_numbers<[1], [0], [0], [1], [0, 0, 1, 1], [], []>} : vector<128x128xbf16>, vector<128x32xbf16>, vector<128x32xf32> -> vector<128x32xf32>
    %12 = arith.addf %9, %11 : vector<128x32xf32>
    %c0_7 = arith.constant 0 : index
    %c0_8 = arith.constant 0 : index
    %13 = vector.load %arg7[%c0_7, %c0_8] : memref<12x32xf32, #tpu.memory_space<vmem>>, vector<1x32xf32>
    %c1 = arith.constant 1 : index
    %c0_9 = arith.constant 0 : index
    %14 = vector.load %arg7[%c1, %c0_9] : memref<12x32xf32, #tpu.memory_space<vmem>>, vector<1x32xf32>
    %cst_10 = arith.constant dense<0.000000e+00> : vector<32xf32>
    %15 = vector.multi_reduction <add>, %12, %cst_10 [0] : vector<128x32xf32> to vector<32xf32>
    %16 = vector.shape_cast %15 : vector<32xf32> to vector<1x32xf32>
    %cst_11 = arith.constant 7.812500e-03 : f32
    %17 = vector.broadcast %cst_11 : f32 to vector<1x32xf32>
    %18 = arith.mulf %16, %17 : vector<1x32xf32>
    %19 = vector.broadcast %18 : vector<1x32xf32> to vector<128x32xf32>
    %20 = arith.subf %12, %19 : vector<128x32xf32>
    %21 = arith.mulf %20, %20 : vector<128x32xf32>
    %cst_12 = arith.constant dense<0.000000e+00> : vector<32xf32>
    %22 = vector.multi_reduction <add>, %21, %cst_12 [0] : vector<128x32xf32> to vector<32xf32>
    %23 = vector.shape_cast %22 : vector<32xf32> to vector<1x32xf32>
    %cst_13 = arith.constant 7.812500e-03 : f32
    %24 = vector.broadcast %cst_13 : f32 to vector<1x32xf32>
    %25 = arith.mulf %23, %24 : vector<1x32xf32>
    %cst_14 = arith.constant 9.99999974E-6 : f32
    %26 = vector.broadcast %cst_14 : f32 to vector<1x32xf32>
    %27 = arith.addf %25, %26 : vector<1x32xf32>
    %28 = math.rsqrt %27 : vector<1x32xf32>
    %29 = arith.mulf %28, %13 : vector<1x32xf32>
    %30 = vector.broadcast %29 : vector<1x32xf32> to vector<128x32xf32>
    %31 = arith.mulf %20, %30 : vector<128x32xf32>
    %32 = vector.broadcast %14 : vector<1x32xf32> to vector<128x32xf32>
    %33 = arith.addf %31, %32 : vector<128x32xf32>
    %cst_15 = arith.constant 0.000000e+00 : f32
    %34 = vector.broadcast %cst_15 : f32 to vector<128x32xf32>
    %35 = arith.maximumf %33, %34 : vector<128x32xf32>
    %c0_16 = arith.constant 0 : index
    %c0_17 = arith.constant 0 : index
    %36 = vector.load %arg6[%c0_16, %c0_17] : memref<96x32xbf16, #tpu.memory_space<vmem>>, vector<32x32xbf16>
    %37 = arith.truncf %35 : vector<128x32xf32> to vector<128x32xbf16>
    %cst_18 = arith.constant dense<0.000000e+00> : vector<128x32xf32>
    %38 = tpu.matmul %37, %36, %cst_18 {dimension_numbers = #tpu.dot_dimension_numbers<[1], [0], [0], [1], [0, 0, 1, 1], [], []>} : vector<128x32xbf16>, vector<32x32xbf16>, vector<128x32xf32> -> vector<128x32xf32>
    %39 = arith.truncf %35 : vector<128x32xf32> to vector<128x32xbf16>
    %cst_19 = arith.constant dense<0.000000e+00> : vector<128x32xf32>
    %40 = tpu.matmul %0, %39, %cst_19 {dimension_numbers = #tpu.dot_dimension_numbers<[1], [0], [0], [1], [0, 0, 1, 1], [], []>} : vector<128x128xbf16>, vector<128x32xbf16>, vector<128x32xf32> -> vector<128x32xf32>
    %c1_20 = arith.constant 1 : index
    %41 = memref.load %arg0[%c1_20] : memref<5xf32, #tpu.memory_space<smem>>
    %cst_21 = arith.constant 1.000000e+00 : f32
    %42 = arith.addf %cst_21, %41 : f32
    %43 = vector.broadcast %42 : f32 to vector<128x32xf32>
    %44 = arith.mulf %43, %35 : vector<128x32xf32>
    %45 = arith.addf %44, %40 : vector<128x32xf32>
    %c0_22 = arith.constant 0 : index
    %c0_23 = arith.constant 0 : index
    %c0_24 = arith.constant 0 : index
    %46 = vector.load %arg5[%c0_22, %c0_23, %c0_24] : memref<4x32x32xbf16, #tpu.memory_space<vmem>>, vector<1x32x32xbf16>
    %47 = vector.shape_cast %46 : vector<1x32x32xbf16> to vector<32x32xbf16>
    %48 = arith.truncf %45 : vector<128x32xf32> to vector<128x32xbf16>
    %cst_25 = arith.constant dense<0.000000e+00> : vector<128x32xf32>
    %49 = tpu.matmul %48, %47, %cst_25 {dimension_numbers = #tpu.dot_dimension_numbers<[1], [0], [0], [1], [0, 0, 1, 1], [], []>} : vector<128x32xbf16>, vector<32x32xbf16>, vector<128x32xf32> -> vector<128x32xf32>
    %c2 = arith.constant 2 : index
    %c0_26 = arith.constant 0 : index
    %50 = vector.load %arg7[%c2, %c0_26] : memref<12x32xf32, #tpu.memory_space<vmem>>, vector<1x32xf32>
    %c3 = arith.constant 3 : index
    %c0_27 = arith.constant 0 : index
    %51 = vector.load %arg7[%c3, %c0_27] : memref<12x32xf32, #tpu.memory_space<vmem>>, vector<1x32xf32>
    %cst_28 = arith.constant dense<0.000000e+00> : vector<32xf32>
    %52 = vector.multi_reduction <add>, %49, %cst_28 [0] : vector<128x32xf32> to vector<32xf32>
    %53 = vector.shape_cast %52 : vector<32xf32> to vector<1x32xf32>
    %cst_29 = arith.constant 7.812500e-03 : f32
    %54 = vector.broadcast %cst_29 : f32 to vector<1x32xf32>
    %55 = arith.mulf %53, %54 : vector<1x32xf32>
    %56 = vector.broadcast %55 : vector<1x32xf32> to vector<128x32xf32>
    %57 = arith.subf %49, %56 : vector<128x32xf32>
    %58 = arith.mulf %57, %57 : vector<128x32xf32>
    %cst_30 = arith.constant dense<0.000000e+00> : vector<32xf32>
    %59 = vector.multi_reduction <add>, %58, %cst_30 [0] : vector<128x32xf32> to vector<32xf32>
    %60 = vector.shape_cast %59 : vector<32xf32> to vector<1x32xf32>
    %cst_31 = arith.constant 7.812500e-03 : f32
    %61 = vector.broadcast %cst_31 : f32 to vector<1x32xf32>
    %62 = arith.mulf %60, %61 : vector<1x32xf32>
    %cst_32 = arith.constant 9.99999974E-6 : f32
    %63 = vector.broadcast %cst_32 : f32 to vector<1x32xf32>
    %64 = arith.addf %62, %63 : vector<1x32xf32>
    %65 = math.rsqrt %64 : vector<1x32xf32>
    %66 = arith.mulf %65, %50 : vector<1x32xf32>
    %67 = vector.broadcast %66 : vector<1x32xf32> to vector<128x32xf32>
    %68 = arith.mulf %57, %67 : vector<128x32xf32>
    %69 = vector.broadcast %51 : vector<1x32xf32> to vector<128x32xf32>
    %70 = arith.addf %68, %69 : vector<128x32xf32>
    %cst_33 = arith.constant 0.000000e+00 : f32
    %71 = vector.broadcast %cst_33 : f32 to vector<128x32xf32>
    %72 = arith.maximumf %70, %71 : vector<128x32xf32>
    %c32 = arith.constant 32 : index
    %c0_34 = arith.constant 0 : index
    %73 = vector.load %arg6[%c32, %c0_34] : memref<96x32xbf16, #tpu.memory_space<vmem>>, vector<32x32xbf16>
    %74 = arith.truncf %72 : vector<128x32xf32> to vector<128x32xbf16>
    %cst_35 = arith.constant dense<0.000000e+00> : vector<128x32xf32>
    %75 = tpu.matmul %74, %73, %cst_35 {dimension_numbers = #tpu.dot_dimension_numbers<[1], [0], [0], [1], [0, 0, 1, 1], [], []>} : vector<128x32xbf16>, vector<32x32xbf16>, vector<128x32xf32> -> vector<128x32xf32>
    %76 = arith.addf %38, %75 : vector<128x32xf32>
    %77 = arith.truncf %72 : vector<128x32xf32> to vector<128x32xbf16>
    %cst_36 = arith.constant dense<0.000000e+00> : vector<128x32xf32>
    %78 = tpu.matmul %0, %77, %cst_36 {dimension_numbers = #tpu.dot_dimension_numbers<[1], [0], [0], [1], [0, 0, 1, 1], [], []>} : vector<128x128xbf16>, vector<128x32xbf16>, vector<128x32xf32> -> vector<128x32xf32>
    %c2_37 = arith.constant 2 : index
    %79 = memref.load %arg0[%c2_37] : memref<5xf32, #tpu.memory_space<smem>>
    %cst_38 = arith.constant 1.000000e+00 : f32
    %80 = arith.addf %cst_38, %79 : f32
    %81 = vector.broadcast %80 : f32 to vector<128x32xf32>
    %82 = arith.mulf %81, %72 : vector<128x32xf32>
    %83 = arith.addf %82, %78 : vector<128x32xf32>
    %c1_39 = arith.constant 1 : index
    %c0_40 = arith.constant 0 : index
    %c0_41 = arith.constant 0 : index
    %84 = vector.load %arg5[%c1_39, %c0_40, %c0_41] : memref<4x32x32xbf16, #tpu.memory_space<vmem>>, vector<1x32x32xbf16>
    %85 = vector.shape_cast %84 : vector<1x32x32xbf16> to vector<32x32xbf16>
    %86 = arith.truncf %83 : vector<128x32xf32> to vector<128x32xbf16>
    %cst_42 = arith.constant dense<0.000000e+00> : vector<128x32xf32>
    %87 = tpu.matmul %86, %85, %cst_42 {dimension_numbers = #tpu.dot_dimension_numbers<[1], [0], [0], [1], [0, 0, 1, 1], [], []>} : vector<128x32xbf16>, vector<32x32xbf16>, vector<128x32xf32> -> vector<128x32xf32>
    %c4 = arith.constant 4 : index
    %c0_43 = arith.constant 0 : index
    %88 = vector.load %arg7[%c4, %c0_43] : memref<12x32xf32, #tpu.memory_space<vmem>>, vector<1x32xf32>
    %c5 = arith.constant 5 : index
    %c0_44 = arith.constant 0 : index
    %89 = vector.load %arg7[%c5, %c0_44] : memref<12x32xf32, #tpu.memory_space<vmem>>, vector<1x32xf32>
    %cst_45 = arith.constant dense<0.000000e+00> : vector<32xf32>
    %90 = vector.multi_reduction <add>, %87, %cst_45 [0] : vector<128x32xf32> to vector<32xf32>
    %91 = vector.shape_cast %90 : vector<32xf32> to vector<1x32xf32>
    %cst_46 = arith.constant 7.812500e-03 : f32
    %92 = vector.broadcast %cst_46 : f32 to vector<1x32xf32>
    %93 = arith.mulf %91, %92 : vector<1x32xf32>
    %94 = vector.broadcast %93 : vector<1x32xf32> to vector<128x32xf32>
    %95 = arith.subf %87, %94 : vector<128x32xf32>
    %96 = arith.mulf %95, %95 : vector<128x32xf32>
    %cst_47 = arith.constant dense<0.000000e+00> : vector<32xf32>
    %97 = vector.multi_reduction <add>, %96, %cst_47 [0] : vector<128x32xf32> to vector<32xf32>
    %98 = vector.shape_cast %97 : vector<32xf32> to vector<1x32xf32>
    %cst_48 = arith.constant 7.812500e-03 : f32
    %99 = vector.broadcast %cst_48 : f32 to vector<1x32xf32>
    %100 = arith.mulf %98, %99 : vector<1x32xf32>
    %cst_49 = arith.constant 9.99999974E-6 : f32
    %101 = vector.broadcast %cst_49 : f32 to vector<1x32xf32>
    %102 = arith.addf %100, %101 : vector<1x32xf32>
    %103 = math.rsqrt %102 : vector<1x32xf32>
    %104 = arith.mulf %103, %88 : vector<1x32xf32>
    %105 = vector.broadcast %104 : vector<1x32xf32> to vector<128x32xf32>
    %106 = arith.mulf %95, %105 : vector<128x32xf32>
    %107 = vector.broadcast %89 : vector<1x32xf32> to vector<128x32xf32>
    %108 = arith.addf %106, %107 : vector<128x32xf32>
    %cst_50 = arith.constant 0.000000e+00 : f32
    %109 = vector.broadcast %cst_50 : f32 to vector<128x32xf32>
    %110 = arith.maximumf %108, %109 : vector<128x32xf32>
    %c64 = arith.constant 64 : index
    %c0_51 = arith.constant 0 : index
    %111 = vector.load %arg6[%c64, %c0_51] : memref<96x32xbf16, #tpu.memory_space<vmem>>, vector<32x32xbf16>
    %112 = arith.truncf %110 : vector<128x32xf32> to vector<128x32xbf16>
    %cst_52 = arith.constant dense<0.000000e+00> : vector<128x32xf32>
    %113 = tpu.matmul %112, %111, %cst_52 {dimension_numbers = #tpu.dot_dimension_numbers<[1], [0], [0], [1], [0, 0, 1, 1], [], []>} : vector<128x32xbf16>, vector<32x32xbf16>, vector<128x32xf32> -> vector<128x32xf32>
    %114 = arith.addf %76, %113 : vector<128x32xf32>
    %c6 = arith.constant 6 : index
    %c0_53 = arith.constant 0 : index
    %115 = vector.load %arg7[%c6, %c0_53] : memref<12x32xf32, #tpu.memory_space<vmem>>, vector<1x32xf32>
    %c7 = arith.constant 7 : index
    %c0_54 = arith.constant 0 : index
    %116 = vector.load %arg7[%c7, %c0_54] : memref<12x32xf32, #tpu.memory_space<vmem>>, vector<1x32xf32>
    %cst_55 = arith.constant dense<0.000000e+00> : vector<32xf32>
    %117 = vector.multi_reduction <add>, %114, %cst_55 [0] : vector<128x32xf32> to vector<32xf32>
    %118 = vector.shape_cast %117 : vector<32xf32> to vector<1x32xf32>
    %cst_56 = arith.constant 7.812500e-03 : f32
    %119 = vector.broadcast %cst_56 : f32 to vector<1x32xf32>
    %120 = arith.mulf %118, %119 : vector<1x32xf32>
    %121 = vector.broadcast %120 : vector<1x32xf32> to vector<128x32xf32>
    %122 = arith.subf %114, %121 : vector<128x32xf32>
    %123 = arith.mulf %122, %122 : vector<128x32xf32>
    %cst_57 = arith.constant dense<0.000000e+00> : vector<32xf32>
    %124 = vector.multi_reduction <add>, %123, %cst_57 [0] : vector<128x32xf32> to vector<32xf32>
    %125 = vector.shape_cast %124 : vector<32xf32> to vector<1x32xf32>
    %cst_58 = arith.constant 7.812500e-03 : f32
    %126 = vector.broadcast %cst_58 : f32 to vector<1x32xf32>
    %127 = arith.mulf %125, %126 : vector<1x32xf32>
    %cst_59 = arith.constant 9.99999974E-6 : f32
    %128 = vector.broadcast %cst_59 : f32 to vector<1x32xf32>
    %129 = arith.addf %127, %128 : vector<1x32xf32>
    %130 = math.rsqrt %129 : vector<1x32xf32>
    %131 = arith.mulf %130, %115 : vector<1x32xf32>
    %132 = vector.broadcast %131 : vector<1x32xf32> to vector<128x32xf32>
    %133 = arith.mulf %122, %132 : vector<128x32xf32>
    %134 = vector.broadcast %116 : vector<1x32xf32> to vector<128x32xf32>
    %135 = arith.addf %133, %134 : vector<128x32xf32>
    %136 = vector.extract_strided_slice %135 {offsets = [0, 0], sizes = [16, 32], strides = [1, 1]} : vector<128x32xf32> to vector<16x32xf32>
    %137 = vector.extract_strided_slice %135 {offsets = [16, 0], sizes = [16, 32], strides = [1, 1]} : vector<128x32xf32> to vector<16x32xf32>
    %138 = arith.addf %136, %137 : vector<16x32xf32>
    %139 = vector.extract_strided_slice %135 {offsets = [32, 0], sizes = [16, 32], strides = [1, 1]} : vector<128x32xf32> to vector<16x32xf32>
    %140 = arith.addf %138, %139 : vector<16x32xf32>
    %141 = vector.extract_strided_slice %135 {offsets = [48, 0], sizes = [16, 32], strides = [1, 1]} : vector<128x32xf32> to vector<16x32xf32>
    %142 = arith.addf %140, %141 : vector<16x32xf32>
    %143 = vector.extract_strided_slice %135 {offsets = [64, 0], sizes = [16, 32], strides = [1, 1]} : vector<128x32xf32> to vector<16x32xf32>
    %144 = arith.addf %142, %143 : vector<16x32xf32>
    %145 = vector.extract_strided_slice %135 {offsets = [80, 0], sizes = [16, 32], strides = [1, 1]} : vector<128x32xf32> to vector<16x32xf32>
    %146 = arith.addf %144, %145 : vector<16x32xf32>
    %147 = vector.extract_strided_slice %135 {offsets = [96, 0], sizes = [16, 32], strides = [1, 1]} : vector<128x32xf32> to vector<16x32xf32>
    %148 = arith.addf %146, %147 : vector<16x32xf32>
    %149 = vector.extract_strided_slice %135 {offsets = [112, 0], sizes = [16, 32], strides = [1, 1]} : vector<128x32xf32> to vector<16x32xf32>
    %150 = arith.addf %148, %149 : vector<16x32xf32>
    %cst_60 = arith.constant 1.250000e-01 : f32
    %151 = vector.broadcast %cst_60 : f32 to vector<16x32xf32>
    %152 = arith.mulf %150, %151 : vector<16x32xf32>
    %c0_61 = arith.constant 0 : index
    %c0_62 = arith.constant 0 : index
    %153 = vector.load %arg3[%c0_61, %c0_62] : memref<16x4xf32, #tpu.memory_space<vmem>>, vector<16x4xf32>
    %c0_63 = arith.constant 0 : index
    %c0_64 = arith.constant 0 : index
    %154 = vector.load %arg8[%c0_63, %c0_64] : memref<4x32xbf16, #tpu.memory_space<vmem>>, vector<4x32xbf16>
    %155 = arith.truncf %153 : vector<16x4xf32> to vector<16x4xbf16>
    %cst_65 = arith.constant dense<0.000000e+00> : vector<16x32xf32>
    %156 = tpu.matmul %155, %154, %cst_65 {dimension_numbers = #tpu.dot_dimension_numbers<[1], [0], [0], [1], [0, 0, 1, 1], [], []>} : vector<16x4xbf16>, vector<4x32xbf16>, vector<16x32xf32> -> vector<16x32xf32>
    %c0_66 = arith.constant 0 : index
    %c0_67 = arith.constant 0 : index
    %157 = vector.load %arg9[%c0_66, %c0_67] : memref<64x32xbf16, #tpu.memory_space<vmem>>, vector<32x32xbf16>
    %158 = arith.truncf %156 : vector<16x32xf32> to vector<16x32xbf16>
    %cst_68 = arith.constant dense<0.000000e+00> : vector<16x32xf32>
    %159 = tpu.matmul %158, %157, %cst_68 {dimension_numbers = #tpu.dot_dimension_numbers<[1], [0], [0], [1], [0, 0, 1, 1], [], []>} : vector<16x32xbf16>, vector<32x32xbf16>, vector<16x32xf32> -> vector<16x32xf32>
    %c32_69 = arith.constant 32 : index
    %c0_70 = arith.constant 0 : index
    %160 = vector.load %arg9[%c32_69, %c0_70] : memref<64x32xbf16, #tpu.memory_space<vmem>>, vector<32x32xbf16>
    %161 = arith.truncf %152 : vector<16x32xf32> to vector<16x32xbf16>
    %cst_71 = arith.constant dense<0.000000e+00> : vector<16x32xf32>
    %162 = tpu.matmul %161, %160, %cst_71 {dimension_numbers = #tpu.dot_dimension_numbers<[1], [0], [0], [1], [0, 0, 1, 1], [], []>} : vector<16x32xbf16>, vector<32x32xbf16>, vector<16x32xf32> -> vector<16x32xf32>
    %163 = arith.addf %159, %162 : vector<16x32xf32>
    %c0_72 = arith.constant 0 : index
    %c0_73 = arith.constant 0 : index
    %164 = vector.load %arg2[%c0_72, %c0_73] : memref<128x128xbf16, #tpu.memory_space<vmem>>, vector<16x16xbf16>
    %165 = arith.truncf %163 : vector<16x32xf32> to vector<16x32xbf16>
    %cst_74 = arith.constant dense<0.000000e+00> : vector<16x32xf32>
    %166 = tpu.matmul %164, %165, %cst_74 {dimension_numbers = #tpu.dot_dimension_numbers<[1], [0], [0], [1], [0, 0, 1, 1], [], []>} : vector<16x16xbf16>, vector<16x32xbf16>, vector<16x32xf32> -> vector<16x32xf32>
    %c3_75 = arith.constant 3 : index
    %167 = memref.load %arg0[%c3_75] : memref<5xf32, #tpu.memory_space<smem>>
    %cst_76 = arith.constant 1.000000e+00 : f32
    %168 = arith.addf %cst_76, %167 : f32
    %169 = vector.broadcast %168 : f32 to vector<16x32xf32>
    %170 = arith.mulf %169, %163 : vector<16x32xf32>
    %171 = arith.addf %170, %166 : vector<16x32xf32>
    %c2_77 = arith.constant 2 : index
    %c0_78 = arith.constant 0 : index
    %c0_79 = arith.constant 0 : index
    %172 = vector.load %arg5[%c2_77, %c0_78, %c0_79] : memref<4x32x32xbf16, #tpu.memory_space<vmem>>, vector<1x32x32xbf16>
    %173 = vector.shape_cast %172 : vector<1x32x32xbf16> to vector<32x32xbf16>
    %174 = arith.truncf %171 : vector<16x32xf32> to vector<16x32xbf16>
    %cst_80 = arith.constant dense<0.000000e+00> : vector<16x32xf32>
    %175 = tpu.matmul %174, %173, %cst_80 {dimension_numbers = #tpu.dot_dimension_numbers<[1], [0], [0], [1], [0, 0, 1, 1], [], []>} : vector<16x32xbf16>, vector<32x32xbf16>, vector<16x32xf32> -> vector<16x32xf32>
    %c8 = arith.constant 8 : index
    %c0_81 = arith.constant 0 : index
    %176 = vector.load %arg7[%c8, %c0_81] : memref<12x32xf32, #tpu.memory_space<vmem>>, vector<1x32xf32>
    %c9 = arith.constant 9 : index
    %c0_82 = arith.constant 0 : index
    %177 = vector.load %arg7[%c9, %c0_82] : memref<12x32xf32, #tpu.memory_space<vmem>>, vector<1x32xf32>
    %cst_83 = arith.constant dense<0.000000e+00> : vector<32xf32>
    %178 = vector.multi_reduction <add>, %175, %cst_83 [0] : vector<16x32xf32> to vector<32xf32>
    %179 = vector.shape_cast %178 : vector<32xf32> to vector<1x32xf32>
    %cst_84 = arith.constant 6.250000e-02 : f32
    %180 = vector.broadcast %cst_84 : f32 to vector<1x32xf32>
    %181 = arith.mulf %179, %180 : vector<1x32xf32>
    %182 = vector.broadcast %181 : vector<1x32xf32> to vector<16x32xf32>
    %183 = arith.subf %175, %182 : vector<16x32xf32>
    %184 = arith.mulf %183, %183 : vector<16x32xf32>
    %cst_85 = arith.constant dense<0.000000e+00> : vector<32xf32>
    %185 = vector.multi_reduction <add>, %184, %cst_85 [0] : vector<16x32xf32> to vector<32xf32>
    %186 = vector.shape_cast %185 : vector<32xf32> to vector<1x32xf32>
    %cst_86 = arith.constant 6.250000e-02 : f32
    %187 = vector.broadcast %cst_86 : f32 to vector<1x32xf32>
    %188 = arith.mulf %186, %187 : vector<1x32xf32>
    %cst_87 = arith.constant 9.99999974E-6 : f32
    %189 = vector.broadcast %cst_87 : f32 to vector<1x32xf32>
    %190 = arith.addf %188, %189 : vector<1x32xf32>
    %191 = math.rsqrt %190 : vector<1x32xf32>
    %192 = arith.mulf %191, %176 : vector<1x32xf32>
    %193 = vector.broadcast %192 : vector<1x32xf32> to vector<16x32xf32>
    %194 = arith.mulf %183, %193 : vector<16x32xf32>
    %195 = vector.broadcast %177 : vector<1x32xf32> to vector<16x32xf32>
    %196 = arith.addf %194, %195 : vector<16x32xf32>
    %cst_88 = arith.constant 0.000000e+00 : f32
    %197 = vector.broadcast %cst_88 : f32 to vector<16x32xf32>
    %198 = arith.maximumf %196, %197 : vector<16x32xf32>
    %199 = arith.truncf %198 : vector<16x32xf32> to vector<16x32xbf16>
    %cst_89 = arith.constant dense<0.000000e+00> : vector<16x32xf32>
    %200 = tpu.matmul %164, %199, %cst_89 {dimension_numbers = #tpu.dot_dimension_numbers<[1], [0], [0], [1], [0, 0, 1, 1], [], []>} : vector<16x16xbf16>, vector<16x32xbf16>, vector<16x32xf32> -> vector<16x32xf32>
    %c4_90 = arith.constant 4 : index
    %201 = memref.load %arg0[%c4_90] : memref<5xf32, #tpu.memory_space<smem>>
    %cst_91 = arith.constant 1.000000e+00 : f32
    %202 = arith.addf %cst_91, %201 : f32
    %203 = vector.broadcast %202 : f32 to vector<16x32xf32>
    %204 = arith.mulf %203, %198 : vector<16x32xf32>
    %205 = arith.addf %204, %200 : vector<16x32xf32>
    %c3_92 = arith.constant 3 : index
    %c0_93 = arith.constant 0 : index
    %c0_94 = arith.constant 0 : index
    %206 = vector.load %arg5[%c3_92, %c0_93, %c0_94] : memref<4x32x32xbf16, #tpu.memory_space<vmem>>, vector<1x32x32xbf16>
    %207 = vector.shape_cast %206 : vector<1x32x32xbf16> to vector<32x32xbf16>
    %208 = arith.truncf %205 : vector<16x32xf32> to vector<16x32xbf16>
    %cst_95 = arith.constant dense<0.000000e+00> : vector<16x32xf32>
    %209 = tpu.matmul %208, %207, %cst_95 {dimension_numbers = #tpu.dot_dimension_numbers<[1], [0], [0], [1], [0, 0, 1, 1], [], []>} : vector<16x32xbf16>, vector<32x32xbf16>, vector<16x32xf32> -> vector<16x32xf32>
    %c10 = arith.constant 10 : index
    %c0_96 = arith.constant 0 : index
    %210 = vector.load %arg7[%c10, %c0_96] : memref<12x32xf32, #tpu.memory_space<vmem>>, vector<1x32xf32>
    %c11 = arith.constant 11 : index
    %c0_97 = arith.constant 0 : index
    %211 = vector.load %arg7[%c11, %c0_97] : memref<12x32xf32, #tpu.memory_space<vmem>>, vector<1x32xf32>
    %cst_98 = arith.constant dense<0.000000e+00> : vector<32xf32>
    %212 = vector.multi_reduction <add>, %209, %cst_98 [0] : vector<16x32xf32> to vector<32xf32>
    %213 = vector.shape_cast %212 : vector<32xf32> to vector<1x32xf32>
    %cst_99 = arith.constant 6.250000e-02 : f32
    %214 = vector.broadcast %cst_99 : f32 to vector<1x32xf32>
    %215 = arith.mulf %213, %214 : vector<1x32xf32>
    %216 = vector.broadcast %215 : vector<1x32xf32> to vector<16x32xf32>
    %217 = arith.subf %209, %216 : vector<16x32xf32>
    %218 = arith.mulf %217, %217 : vector<16x32xf32>
    %cst_100 = arith.constant dense<0.000000e+00> : vector<32xf32>
    %219 = vector.multi_reduction <add>, %218, %cst_100 [0] : vector<16x32xf32> to vector<32xf32>
    %220 = vector.shape_cast %219 : vector<32xf32> to vector<1x32xf32>
    %cst_101 = arith.constant 6.250000e-02 : f32
    %221 = vector.broadcast %cst_101 : f32 to vector<1x32xf32>
    %222 = arith.mulf %220, %221 : vector<1x32xf32>
    %cst_102 = arith.constant 9.99999974E-6 : f32
    %223 = vector.broadcast %cst_102 : f32 to vector<1x32xf32>
    %224 = arith.addf %222, %223 : vector<1x32xf32>
    %225 = math.rsqrt %224 : vector<1x32xf32>
    %226 = arith.mulf %225, %210 : vector<1x32xf32>
    %227 = vector.broadcast %226 : vector<1x32xf32> to vector<16x32xf32>
    %228 = arith.mulf %217, %227 : vector<16x32xf32>
    %229 = vector.broadcast %211 : vector<1x32xf32> to vector<16x32xf32>
    %230 = arith.addf %228, %229 : vector<16x32xf32>
    %cst_103 = arith.constant 0.000000e+00 : f32
    %231 = vector.broadcast %cst_103 : f32 to vector<16x32xf32>
    %232 = arith.maximumf %230, %231 : vector<16x32xf32>
    %cst_104 = arith.constant dense<0.000000e+00> : vector<32xf32>
    %233 = vector.multi_reduction <add>, %232, %cst_104 [0] : vector<16x32xf32> to vector<32xf32>
    %234 = vector.shape_cast %233 : vector<32xf32> to vector<1x32xf32>
    %cst_105 = arith.constant 6.250000e-02 : f32
    %235 = vector.broadcast %cst_105 : f32 to vector<1x32xf32>
    %236 = arith.mulf %234, %235 : vector<1x32xf32>
    %c0_106 = arith.constant 0 : index
    %c0_107 = arith.constant 0 : index
    %237 = vector.load %arg10[%c0_106, %c0_107] : memref<8x32xf32, #tpu.memory_space<vmem>>, vector<8x32xf32>
    %238 = vector.broadcast %236 : vector<1x32xf32> to vector<8x32xf32>
    %239 = arith.mulf %237, %238 : vector<8x32xf32>
    %cst_108 = arith.constant dense<0.000000e+00> : vector<8xf32>
    %240 = vector.multi_reduction <add>, %239, %cst_108 [1] : vector<8x32xf32> to vector<8xf32>
    %241 = vector.shape_cast %240 : vector<8xf32> to vector<8x1xf32>
    %c0_109 = arith.constant 0 : index
    %c0_110 = arith.constant 0 : index
    %242 = vector.load %arg11[%c0_109, %c0_110] : memref<8x1xf32, #tpu.memory_space<vmem>>, vector<8x1xf32>
    tpu.vector_store %arg11[%c0_109, %c0_110], %241 {strides = array<i32>} : memref<8x1xf32, #tpu.memory_space<vmem>>, vector<8x1xf32>,
    return
  }
}

</mosaic_0001>

<llo_original>
// kernel: signnet_gnn_s_forward.1
$region0: #{signnet_gnn_s_forward.1}
  #allocation0 [shape = 'u32[]', space=smem, size = 0x4, offset = 0x4, fixed_abs, tag = 'smem constant byte address 0x4 - core index']
  #allocation1 [shape = 'u32[72,128]{1,0:T(1,128)}', space=vmem, size = 0x9000, scoped, tag = 'internal scratch']
  %s0 = inlined_call_operand.vmem [shape: f32[5], index: 0, kind: input, shape index: {}]
  %s1 = inlined_call_operand.vmem [shape: f32[128,1], index: 1, kind: input, shape index: {}]
  %s2 = inlined_call_operand.vmem [shape: bf16[128,128], index: 2, kind: input, shape index: {}]
  %s3 = inlined_call_operand.vmem [shape: f32[16,4], index: 3, kind: input, shape index: {}]
  %s4 = inlined_call_operand.vmem [shape: f32[1,32], index: 4, kind: input, shape index: {}]
  %s5 = inlined_call_operand.vmem [shape: bf16[4,32,32], index: 5, kind: input, shape index: {}]
  %s6 = inlined_call_operand.vmem [shape: bf16[96,32], index: 6, kind: input, shape index: {}]
  %s7 = inlined_call_operand.vmem [shape: f32[12,32], index: 7, kind: input, shape index: {}]
  %s8 = inlined_call_operand.vmem [shape: bf16[4,32], index: 8, kind: input, shape index: {}]
  %s9 = inlined_call_operand.vmem [shape: bf16[64,32], index: 9, kind: input, shape index: {}]
  %s10 = inlined_call_operand.vmem [shape: f32[8,32], index: 10, kind: input, shape index: {}]
  %s11 = inlined_call_operand.vmem [shape: f32[8,1], index: 11, kind: output, shape index: {}]
  %s12 = sld [smem:[#allocation0]]
  $region58: #{signnet_gnn_s_forward.1} parent=0
    _
  %s14 = ssub.s32 1, %s12
  %s15 = scalar_select 0, %s14, %s12
  $region1: #{signnet_gnn_s_forward.1} parent=0
    #allocation2 [shape = 'u8[512]{0}', space=smem, size = 0x200, scoped, tag = 'input window, operand 0, single buffered']
    #allocation3 [shape = 's32[1]{0}', space=sflag, size = 0x4, scoped, tag = 'scoped memory for signnet_gnn_s_forward.1']
    %16 = vsyncpa [#allocation3], 0
    // Predicated region
    $region2: #{signnet_gnn_s_forward.1} parent=1 // pred_check
      _
    $region3: #{signnet_gnn_s_forward.1} parent=1 // pred_check_branch
      %18 = sbr.rel (0) target = $region5
    $region4: #{signnet_gnn_s_forward.1} parent=1 // pred_region
      %20 = vsyncadd [#allocation3], 0
      %s22 = sshll.u32 %s0, 4
      %s23 = int_to_ptr.vmem [resolvable:$true] %s22
      %25 = dma.vmem_to_smem %s23, 16, [#allocation2], [#allocation3]
    $region5: #{signnet_gnn_s_forward.1} parent=1 // pred_fallthru
      _
    // Predicated region
    $region6: #{signnet_gnn_s_forward.1} parent=1 // pred_check
      _
    $region7: #{signnet_gnn_s_forward.1} parent=1 // pred_check_branch
      %27 = sbr.rel (0) target = $region9
    $region8: #{signnet_gnn_s_forward.1} parent=1 // pred_region
      _
    $region9: #{signnet_gnn_s_forward.1} parent=1 // pred_fallthru
      _
    // Predicated region
    $region10: #{signnet_gnn_s_forward.1} parent=1 // pred_check
      _
    $region11: #{signnet_gnn_s_forward.1} parent=1 // pred_check_branch
      %29 = sbr.rel (0) target = $region13
    $region12: #{signnet_gnn_s_forward.1} parent=1 // pred_region
      _
    $region13: #{signnet_gnn_s_forward.1} parent=1 // pred_fallthru
      _
    // Predicated region
    $region14: #{signnet_gnn_s_forward.1} parent=1 // pred_check
      _
    $region15: #{signnet_gnn_s_forward.1} parent=1 // pred_check_branch
      %31 = sbr.rel (0) target = $region17
    $region16: #{signnet_gnn_s_forward.1} parent=1 // pred_region
      _
    $region17: #{signnet_gnn_s_forward.1} parent=1 // pred_fallthru
      _
    // Predicated region
    $region18: #{signnet_gnn_s_forward.1} parent=1 // pred_check
      _
    $region19: #{signnet_gnn_s_forward.1} parent=1 // pred_check_branch
      %33 = sbr.rel (0) target = $region21
    $region20: #{signnet_gnn_s_forward.1} parent=1 // pred_region
      _
    $region21: #{signnet_gnn_s_forward.1} parent=1 // pred_fallthru
      _
    // Predicated region
    $region22: #{signnet_gnn_s_forward.1} parent=1 // pred_check
      _
    $region23: #{signnet_gnn_s_forward.1} parent=1 // pred_check_branch
      %35 = sbr.rel (0) target = $region25
    $region24: #{signnet_gnn_s_forward.1} parent=1 // pred_region
      _
    $region25: #{signnet_gnn_s_forward.1} parent=1 // pred_fallthru
      _
    // Predicated region
    $region26: #{signnet_gnn_s_forward.1} parent=1 // pred_check
      _
    $region27: #{signnet_gnn_s_forward.1} parent=1 // pred_check_branch
      %37 = sbr.rel (0) target = $region29
    $region28: #{signnet_gnn_s_forward.1} parent=1 // pred_region
      _
    $region29: #{signnet_gnn_s_forward.1} parent=1 // pred_fallthru
      _
    // Predicated region
    $region30: #{signnet_gnn_s_forward.1} parent=1 // pred_check
      _
    $region31: #{signnet_gnn_s_forward.1} parent=1 // pred_check_branch
      %39 = sbr.rel (0) target = $region33
    $region32: #{signnet_gnn_s_forward.1} parent=1 // pred_region
      _
    $region33: #{signnet_gnn_s_forward.1} parent=1 // pred_fallthru
      _
    // Predicated region
    $region34: #{signnet_gnn_s_forward.1} parent=1 // pred_check
      _
    $region35: #{signnet_gnn_s_forward.1} parent=1 // pred_check_branch
      %41 = sbr.rel (0) target = $region37
    $region36: #{signnet_gnn_s_forward.1} parent=1 // pred_region
      _
    $region37: #{signnet_gnn_s_forward.1} parent=1 // pred_fallthru
      _
    // Predicated region
    $region38: #{signnet_gnn_s_forward.1} parent=1 // pred_check
      _
    $region39: #{signnet_gnn_s_forward.1} parent=1 // pred_check_branch
      %43 = sbr.rel (0) target = $region41
    $region40: #{signnet_gnn_s_forward.1} parent=1 // pred_region
      _
    $region41: #{signnet_gnn_s_forward.1} parent=1 // pred_fallthru
      _
    // Predicated region
    $region42: #{signnet_gnn_s_forward.1} parent=1 // pred_check
      _
    $region43: #{signnet_gnn_s_forward.1} parent=1 // pred_check_branch
      %45 = sbr.rel (0) target = $region45
    $region44: #{signnet_gnn_s_forward.1} parent=1 // pred_region
      _
    $region45: #{signnet_gnn_s_forward.1} parent=1 // pred_fallthru
      _
    // Predicated region
    $region46: #{signnet_gnn_s_forward.1} parent=1 // pred_check
      _
    $region47: #{signnet_gnn_s_forward.1} parent=1 // pred_check_branch
      %47 = sbr.rel (0) target = $region49
    $region48: #{signnet_gnn_s_forward.1} parent=1 // pred_region
      %49 = dma.done [#allocation3], 16
    $region49: #{signnet_gnn_s_forward.1} parent=1 // pred_fallthru
      _
    %50 = sfence
    %v52 = vld [vmem:[%s2] sm:$0xf]
    %v53 = vld [vmem:[%s2 + $0x4] sm:$0xf]
    %v54 = vld [vmem:[%s2 + $0x8] sm:$0xf]
    %v55 = vld [vmem:[%s2 + $0xc] sm:$0xf]
    %v56 = vld [vmem:[%s2 + $0x10] sm:$0xf]
    %v57 = vld [vmem:[%s2 + $0x14] sm:$0xf]
    %v58 = vld [vmem:[%s2 + $0x18] sm:$0xf]
    %v59 = vld [vmem:[%s2 + $0x1c] sm:$0xf]
    %v60 = vld [vmem:[%s2 + $0x20] sm:$0xf]
    %v61 = vld [vmem:[%s2 + $0x24] sm:$0xf]
    %v62 = vld [vmem:[%s2 + $0x28] sm:$0xf]
    %v63 = vld [vmem:[%s2 + $0x2c] sm:$0xf]
    %v64 = vld [vmem:[%s2 + $0x30] sm:$0xf]
    %v65 = vld [vmem:[%s2 + $0x34] sm:$0xf]
    %v66 = vld [vmem:[%s2 + $0x38] sm:$0xf]
    %v67 = vld [vmem:[%s2 + $0x3c] sm:$0xf]
    %v68 = vld [vmem:[%s1] sm:$0xff]
    %v69 = vld [vmem:[%s1 + $0x8] sm:$0xff]
    %v70 = vld [vmem:[%s1 + $0x10] sm:$0xff]
    %v71 = vld [vmem:[%s1 + $0x18] sm:$0xff]
    %v72 = vld [vmem:[%s1 + $0x20] sm:$0xff]
    %v73 = vld [vmem:[%s1 + $0x28] sm:$0xff]
    %v74 = vld [vmem:[%s1 + $0x30] sm:$0xff]
    %v75 = vld [vmem:[%s1 + $0x38] sm:$0xff]
    %v76 = vld [vmem:[%s1 + $0x40] sm:$0xff]
    %v77 = vld [vmem:[%s1 + $0x48] sm:$0xff]
    %v78 = vld [vmem:[%s1 + $0x50] sm:$0xff]
    %v79 = vld [vmem:[%s1 + $0x58] sm:$0xff]
    %v80 = vld [vmem:[%s1 + $0x60] sm:$0xff]
    %v81 = vld [vmem:[%s1 + $0x68] sm:$0xff]
    %v82 = vld [vmem:[%s1 + $0x70] sm:$0xff]
    %v83 = vld [vmem:[%s1 + $0x78] sm:$0xff]
    %v84 = vld [vmem:[%s4] sm:$0x1]
    %86 = vset.pattern.permute.xlu0 0
    %87 = vperm.xlu0 %86, %v68
    %v88 = vpop.permute.xlu0 %87
    %91 = vset.pattern.permute.xlu0 0
    %92 = vperm.xlu0 %91, %v69
    %v93 = vpop.permute.xlu0 %92
    %96 = vset.pattern.permute.xlu0 0
    %97 = vperm.xlu0 %96, %v70
    %v98 = vpop.permute.xlu0 %97
    %101 = vset.pattern.permute.xlu0 0
    %102 = vperm.xlu0 %101, %v71
    %v103 = vpop.permute.xlu0 %102
    %106 = vset.pattern.permute.xlu0 0
    %107 = vperm.xlu0 %106, %v72
    %v108 = vpop.permute.xlu0 %107
    %111 = vset.pattern.permute.xlu0 0
    %112 = vperm.xlu0 %111, %v73
    %v113 = vpop.permute.xlu0 %112
    %116 = vset.pattern.permute.xlu0 0
    %117 = vperm.xlu0 %116, %v74
    %v118 = vpop.permute.xlu0 %117
    %121 = vset.pattern.permute.xlu0 0
    %122 = vperm.xlu0 %121, %v75
    %v123 = vpop.permute.xlu0 %122
    %126 = vset.pattern.permute.xlu0 0
    %127 = vperm.xlu0 %126, %v76
    %v128 = vpop.permute.xlu0 %127
    %131 = vset.pattern.permute.xlu0 0
    %132 = vperm.xlu0 %131, %v77
    %v133 = vpop.permute.xlu0 %132
    %136 = vset.pattern.permute.xlu0 0
    %137 = vperm.xlu0 %136, %v78
    %v138 = vpop.permute.xlu0 %137
    %141 = vset.pattern.permute.xlu0 0
    %142 = vperm.xlu0 %141, %v79
    %v143 = vpop.permute.xlu0 %142
    %146 = vset.pattern.permute.xlu0 0
    %147 = vperm.xlu0 %146, %v80
    %v148 = vpop.permute.xlu0 %147
    %151 = vset.pattern.permute.xlu0 0
    %152 = vperm.xlu0 %151, %v81
    %v153 = vpop.permute.xlu0 %152
    %156 = vset.pattern.permute.xlu0 0
    %157 = vperm.xlu0 %156, %v82
    %v158 = vpop.permute.xlu0 %157
    %161 = vset.pattern.permute.xlu0 0
    %162 = vperm.xlu0 %161, %v83
    %v163 = vpop.permute.xlu0 %162
    %v166 = vperm.slane %v84, 0
    %v168 = vmul.f32 %v88, %v166
    %v169 = vmul.f32 %v93, %v166
    %v170 = vmul.f32 %v98, %v166
    %v171 = vmul.f32 %v103, %v166
    %v172 = vmul.f32 %v108, %v166
    %v173 = vmul.f32 %v113, %v166
    %v174 = vmul.f32 %v118, %v166
    %v175 = vmul.f32 %v123, %v166
    %v176 = vmul.f32 %v128, %v166
    %v177 = vmul.f32 %v133, %v166
    %v178 = vmul.f32 %v138, %v166
    %v179 = vmul.f32 %v143, %v166
    %v180 = vmul.f32 %v148, %v166
    %v181 = vmul.f32 %v153, %v166
    %v182 = vmul.f32 %v158, %v166
    %v183 = vmul.f32 %v163, %v166
    %s184 = sld [smem:[#allocation2]]
    %s185 = sadd.f32 %s184, 1.0
    %v186 = vstv %s185
    %v187 = vmul.f32 %v186, %v168
    %v188 = vmul.f32 %v186, %v169
    %v189 = vmul.f32 %v186, %v170
    %v190 = vmul.f32 %v186, %v171
    %v191 = vmul.f32 %v186, %v172
    %v192 = vmul.f32 %v186, %v173
    %v193 = vmul.f32 %v186, %v174
    %v194 = vmul.f32 %v186, %v175
    %v195 = vmul.f32 %v186, %v176
    %v196 = vmul.f32 %v186, %v177
    %v197 = vmul.f32 %v186, %v178
    %v198 = vmul.f32 %v186, %v179
    %v199 = vmul.f32 %v186, %v180
    %v200 = vmul.f32 %v186, %v181
    %v201 = vmul.f32 %v186, %v182
    %v202 = vmul.f32 %v186, %v183
    %v203 = vpack.c.bf16 %v169, %v168
    %v204 = vpack.c.bf16 %v171, %v170
    %v205 = vpack.c.bf16 %v173, %v172
    %v206 = vpack.c.bf16 %v175, %v174
    %v207 = vpack.c.bf16 %v177, %v176
    %v208 = vpack.c.bf16 %v179, %v178
    %v209 = vpack.c.bf16 %v181, %v180
    %v210 = vpack.c.bf16 %v183, %v182
    %v227 = vunpack.c.l.b16 %v52
    %v228 = vunpack.c.l.b16 %v53
    %v229 = vunpack.c.l.b16 %v54
    %v230 = vunpack.c.l.b16 %v55
    %v231 = vunpack.c.l.b16 %v56
    %v232 = vunpack.c.l.b16 %v57
    %v233 = vunpack.c.l.b16 %v58
    %v234 = vunpack.c.l.b16 %v59
    %v235 = vunpack.c.l.b16 %v60
    %v236 = vunpack.c.l.b16 %v61
    %v237 = vunpack.c.l.b16 %v62
    %v238 = vunpack.c.l.b16 %v63
    %v239 = vunpack.c.l.b16 %v64
    %v240 = vunpack.c.l.b16 %v65
    %v241 = vunpack.c.l.b16 %v66
    %v242 = vunpack.c.l.b16 %v67
    %v243 = vpack.c.b16 %v228, %v227
    %v244 = vpack.c.b16 %v230, %v229
    %v245 = vpack.c.b16 %v232, %v231
    %v246 = vpack.c.b16 %v234, %v233
    %v247 = vpack.c.b16 %v236, %v235
    %v248 = vpack.c.b16 %v238, %v237
    %v249 = vpack.c.b16 %v240, %v239
    %v250 = vpack.c.b16 %v242, %v241
    %259 = vmatpush.bf16.msra.mxu0 %v210
    %260 = vmatpush.bf16.msra.mxu0 %v209
    %261 = vmatpush.bf16.msra.mxu0 %v208
    %262 = vmatpush.bf16.msra.mxu0 %v207
    %263 = vmatpush.bf16.msra.mxu0 %v206
    %264 = vmatpush.bf16.msra.mxu0 %v205
    %265 = vmatpush.bf16.msra.mxu0 %v204
    %266 = vmatpush.bf16.msra.mxu0 %v203
    %267 = vmatmul.bf16.gmra.mxu0 %v243
    %v268 = vpop.f32.mrf.mxu0
    %v269 = vadd.f32 0.0, %v268
    %v270 = vpop.f32.mrf.mxu0
    %v271 = vadd.f32 0.0, %v270
    %272 = vmatmul.bf16.gmra.mxu0 %v244
    %v273 = vpop.f32.mrf.mxu0
    %v274 = vadd.f32 0.0, %v273
    %v275 = vpop.f32.mrf.mxu0
    %v276 = vadd.f32 0.0, %v275
    %277 = vmatmul.bf16.gmra.mxu0 %v245
    %v278 = vpop.f32.mrf.mxu0
    %v279 = vadd.f32 0.0, %v278
    %v280 = vpop.f32.mrf.mxu0
    %v281 = vadd.f32 0.0, %v280
    %282 = vmatmul.bf16.gmra.mxu0 %v246
    %v283 = vpop.f32.mrf.mxu0
    %v284 = vadd.f32 0.0, %v283
    %v285 = vpop.f32.mrf.mxu0
    %v286 = vadd.f32 0.0, %v285
    %287 = vmatmul.bf16.gmra.mxu0 %v247
    %v288 = vpop.f32.mrf.mxu0
    %v289 = vadd.f32 0.0, %v288
    %v290 = vpop.f32.mrf.mxu0
    %v291 = vadd.f32 0.0, %v290
    %292 = vmatmul.bf16.gmra.mxu0 %v248
    %v293 = vpop.f32.mrf.mxu0
    %v294 = vadd.f32 0.0, %v293
    %v295 = vpop.f32.mrf.mxu0
    %v296 = vadd.f32 0.0, %v295
    %297 = vmatmul.bf16.gmra.mxu0 %v249
    %v298 = vpop.f32.mrf.mxu0
    %v299 = vadd.f32 0.0, %v298
    %v300 = vpop.f32.mrf.mxu0
    %v301 = vadd.f32 0.0, %v300
    %302 = vmatmul.bf16.gmra.mxu0 %v250
    %v303 = vpop.f32.mrf.mxu0
    %v304 = vadd.f32 0.0, %v303
    %v305 = vpop.f32.mrf.mxu0
    %v306 = vadd.f32 0.0, %v305
    %307 = vdwg.mxu0
    %v308 = vadd.f32 %v187, %v269
    %v309 = vadd.f32 %v188, %v271
    %v310 = vadd.f32 %v189, %v274
    %v311 = vadd.f32 %v190, %v276
    %v312 = vadd.f32 %v191, %v279
    %v313 = vadd.f32 %v192, %v281
    %v314 = vadd.f32 %v193, %v284
    %v315 = vadd.f32 %v194, %v286
    %v316 = vadd.f32 %v195, %v289
    %v317 = vadd.f32 %v196, %v291
    %v318 = vadd.f32 %v197, %v294
    %v319 = vadd.f32 %v198, %v296
    %v320 = vadd.f32 %v199, %v299
    %v321 = vadd.f32 %v200, %v301
    %v322 = vadd.f32 %v201, %v304
    %v323 = vadd.f32 %v202, %v306
    %v324 = vld [vmem:[%s7] sm:$0x1]
    %v325 = vld [vmem:[%s7 + $0x1] sm:$0x1]
    %vm326 = vcmask 261120
    %v327 = vsel %vm326, %v308, 0.0
    %v328 = vsel %vm326, %v309, 0.0
    %v329 = vadd.f32 %v327, %v328
    %v330 = vsel %vm326, %v310, 0.0
    %v331 = vadd.f32 %v329, %v330
    %v332 = vsel %vm326, %v311, 0.0
    %v333 = vadd.f32 %v331, %v332
    %v334 = vsel %vm326, %v312, 0.0
    %v335 = vadd.f32 %v333, %v334
    %v336 = vsel %vm326, %v313, 0.0
    %v337 = vadd.f32 %v335, %v336
    %v338 = vsel %vm326, %v314, 0.0
    %v339 = vadd.f32 %v337, %v338
    %v340 = vsel %vm326, %v315, 0.0
    %v341 = vadd.f32 %v339, %v340
    %v342 = vsel %vm326, %v316, 0.0
    %v343 = vadd.f32 %v341, %v342
    %v344 = vsel %vm326, %v317, 0.0
    %v345 = vadd.f32 %v343, %v344
    %v346 = vsel %vm326, %v318, 0.0
    %v347 = vadd.f32 %v345, %v346
    %v348 = vsel %vm326, %v319, 0.0
    %v349 = vadd.f32 %v347, %v348
    %v350 = vsel %vm326, %v320, 0.0
    %v351 = vadd.f32 %v349, %v350
    %v352 = vsel %vm326, %v321, 0.0
    %v353 = vadd.f32 %v351, %v352
    %v354 = vsel %vm326, %v322, 0.0
    %v355 = vadd.f32 %v353, %v354
    %v356 = vsel %vm326, %v323, 0.0
    %v357 = vadd.f32 %v355, %v356
    %v358 = vrot.slane %v357, 4
    %v359 = vadd.f32 %v357, %v358
    %v360 = vrot.slane %v359, 2
    %v361 = vadd.f32 %v359, %v360
    %v362 = vrot.slane %v361, 1
    %v363 = vadd.f32 %v361, %v362
    %v364 = vmul.f32 %v363, 0.0078125
    %v365 = vsub.f32 %v308, %v364
    %v366 = vsub.f32 %v309, %v364
    %v367 = vsub.f32 %v310, %v364
    %v368 = vsub.f32 %v311, %v364
    %v369 = vsub.f32 %v312, %v364
    %v370 = vsub.f32 %v313, %v364
    %v371 = vsub.f32 %v314, %v364
    %v372 = vsub.f32 %v315, %v364
    %v373 = vsub.f32 %v316, %v364
    %v374 = vsub.f32 %v317, %v364
    %v375 = vsub.f32 %v318, %v364
    %v376 = vsub.f32 %v319, %v364
    %v377 = vsub.f32 %v320, %v364
    %v378 = vsub.f32 %v321, %v364
    %v379 = vsub.f32 %v322, %v364
    %v380 = vsub.f32 %v323, %v364
    %v381 = vmul.f32 %v365, %v365
    %v382 = vmul.f32 %v366, %v366
    %v383 = vmul.f32 %v367, %v367
    %v384 = vmul.f32 %v368, %v368
    %v385 = vmul.f32 %v369, %v369
    %v386 = vmul.f32 %v370, %v370
    %v387 = vmul.f32 %v371, %v371
    %v388 = vmul.f32 %v372, %v372
    %v389 = vmul.f32 %v373, %v373
    %v390 = vmul.f32 %v374, %v374
    %v391 = vmul.f32 %v375, %v375
    %v392 = vmul.f32 %v376, %v376
    %v393 = vmul.f32 %v377, %v377
    %v394 = vmul.f32 %v378, %v378
    %v395 = vmul.f32 %v379, %v379
    %v396 = vmul.f32 %v380, %v380
    %v397 = vsel %vm326, %v381, 0.0
    %v398 = vsel %vm326, %v382, 0.0
    %v399 = vadd.f32 %v397, %v398
    %v400 = vsel %vm326, %v383, 0.0
    %v401 = vadd.f32 %v399, %v400
    %v402 = vsel %vm326, %v384, 0.0
    %v403 = vadd.f32 %v401, %v402
    %v404 = vsel %vm326, %v385, 0.0
    %v405 = vadd.f32 %v403, %v404
    %v406 = vsel %vm326, %v386, 0.0
    %v407 = vadd.f32 %v405, %v406
    %v408 = vsel %vm326, %v387, 0.0
    %v409 = vadd.f32 %v407, %v408
    %v410 = vsel %vm326, %v388, 0.0
    %v411 = vadd.f32 %v409, %v410
    %v412 = vsel %vm326, %v389, 0.0
    %v413 = vadd.f32 %v411, %v412
    %v414 = vsel %vm326, %v390, 0.0
    %v415 = vadd.f32 %v413, %v414
    %v416 = vsel %vm326, %v391, 0.0
    %v417 = vadd.f32 %v415, %v416
    %v418 = vsel %vm326, %v392, 0.0
    %v419 = vadd.f32 %v417, %v418
    %v420 = vsel %vm326, %v393, 0.0
    %v421 = vadd.f32 %v419, %v420
    %v422 = vsel %vm326, %v394, 0.0
    %v423 = vadd.f32 %v421, %v422
    %v424 = vsel %vm326, %v395, 0.0
    %v425 = vadd.f32 %v423, %v424
    %v426 = vsel %vm326, %v396, 0.0
    %v427 = vadd.f32 %v425, %v426
    %v428 = vrot.slane %v427, 4
    %v429 = vadd.f32 %v427, %v428
    %v430 = vrot.slane %v429, 2
    %v431 = vadd.f32 %v429, %v430
    %v432 = vrot.slane %v431, 1
    %v433 = vadd.f32 %v431, %v432
    %v434 = vmul.f32 %v433, 0.0078125
    %v435 = vadd.f32 %v434, 1e-05
    %v436 = vrsqrt.pop %v435
    %v437 = vmul.f32 %v436, %v435
    %v438 = vmul.f32 %v437, %v436
    %v439 = vmul.f32 0.5, %v438
    %v440 = vsub.f32 1.5, %v439
    %v441 = vmul.f32 %v436, %v440
    %vm442 = vweird.f32 %v435
    %vm443 = vweird.f32 %v436
    %vm444 = vmor %vm442, %vm443
    %v445 = vsel %vm444, %v436, %v441
    %v446 = vmul.f32 %v445, %v324
    %v447 = vperm.slane %v446, 0
    %v448 = vmul.f32 %v365, %v447
    %v449 = vmul.f32 %v366, %v447
    %v450 = vmul.f32 %v367, %v447
    %v451 = vmul.f32 %v368, %v447
    %v452 = vmul.f32 %v369, %v447
    %v453 = vmul.f32 %v370, %v447
    %v454 = vmul.f32 %v371, %v447
    %v455 = vmul.f32 %v372, %v447
    %v456 = vmul.f32 %v373, %v447
    %v457 = vmul.f32 %v374, %v447
    %v458 = vmul.f32 %v375, %v447
    %v459 = vmul.f32 %v376, %v447
    %v460 = vmul.f32 %v377, %v447
    %v461 = vmul.f32 %v378, %v447
    %v462 = vmul.f32 %v379, %v447
    %v463 = vmul.f32 %v380, %v447
    %v464 = vperm.slane %v325, 0
    %v465 = vadd.f32 %v448, %v464
    %v466 = vadd.f32 %v449, %v464
    %v467 = vadd.f32 %v450, %v464
    %v468 = vadd.f32 %v451, %v464
    %v469 = vadd.f32 %v452, %v464
    %v470 = vadd.f32 %v453, %v464
    %v471 = vadd.f32 %v454, %v464
    %v472 = vadd.f32 %v455, %v464
    %v473 = vadd.f32 %v456, %v464
    %v474 = vadd.f32 %v457, %v464
    %v475 = vadd.f32 %v458, %v464
    %v476 = vadd.f32 %v459, %v464
    %v477 = vadd.f32 %v460, %v464
    %v478 = vadd.f32 %v461, %v464
    %v479 = vadd.f32 %v462, %v464
    %v480 = vadd.f32 %v463, %v464
    %v481 = vmax.f32 %v465, 0.0
    %v482 = vmax.f32 %v466, 0.0
    %v483 = vmax.f32 %v467, 0.0
    %v484 = vmax.f32 %v468, 0.0
    %v485 = vmax.f32 %v469, 0.0
    %v486 = vmax.f32 %v470, 0.0
    %v487 = vmax.f32 %v471, 0.0
    %v488 = vmax.f32 %v472, 0.0
    %v489 = vmax.f32 %v473, 0.0
    %v490 = vmax.f32 %v474, 0.0
    %v491 = vmax.f32 %v475, 0.0
    %v492 = vmax.f32 %v476, 0.0
    %v493 = vmax.f32 %v477, 0.0
    %v494 = vmax.f32 %v478, 0.0
    %v495 = vmax.f32 %v479, 0.0
    %v496 = vmax.f32 %v480, 0.0
    %v497 = vld [vmem:[%s6] sm:$0xf]
    %v498 = vld [vmem:[%s6 + $0x4] sm:$0xf]
    %v499 = vld [vmem:[%s6 + $0x8] sm:$0xf]
    %v500 = vld [vmem:[%s6 + $0xc] sm:$0xf]
    %v501 = vpack.c.bf16 %v482, %v481
    %v502 = vpack.c.bf16 %v484, %v483
    %v503 = vpack.c.bf16 %v486, %v485
    %v504 = vpack.c.bf16 %v488, %v487
    %v505 = vpack.c.bf16 %v490, %v489
    %v506 = vpack.c.bf16 %v492, %v491
    %v507 = vpack.c.bf16 %v494, %v493
    %v508 = vpack.c.bf16 %v496, %v495
    %509 = vmatpush.bf16.msra.mxu0 %v508
    %510 = vmatpush.bf16.msra.mxu0 %v507
    %511 = vmatpush.bf16.msra.mxu0 %v506
    %512 = vmatpush.bf16.msra.mxu0 %v505
    %513 = vmatpush.bf16.msra.mxu0 %v504
    %514 = vmatpush.bf16.msra.mxu0 %v503
    %515 = vmatpush.bf16.msra.mxu0 %v502
    %516 = vmatpush.bf16.msra.mxu0 %v501
    %517 = vmatmul.bf16.gmra.mxu0 %v243
    %v518 = vpop.f32.mrf.mxu0
    %v519 = vadd.f32 0.0, %v518
    %v520 = vpop.f32.mrf.mxu0
    %v521 = vadd.f32 0.0, %v520
    %522 = vmatmul.bf16.gmra.mxu0 %v244
    %v523 = vpop.f32.mrf.mxu0
    %v524 = vadd.f32 0.0, %v523
    %v525 = vpop.f32.mrf.mxu0
    %v526 = vadd.f32 0.0, %v525
    %527 = vmatmul.bf16.gmra.mxu0 %v245
    %v528 = vpop.f32.mrf.mxu0
    %v529 = vadd.f32 0.0, %v528
    %v530 = vpop.f32.mrf.mxu0
    %v531 = vadd.f32 0.0, %v530
    %532 = vmatmul.bf16.gmra.mxu0 %v246
    %v533 = vpop.f32.mrf.mxu0
    %v534 = vadd.f32 0.0, %v533
    %v535 = vpop.f32.mrf.mxu0
    %v536 = vadd.f32 0.0, %v535
    %537 = vmatmul.bf16.gmra.mxu0 %v247
    %v538 = vpop.f32.mrf.mxu0
    %v539 = vadd.f32 0.0, %v538
    %v540 = vpop.f32.mrf.mxu0
    %v541 = vadd.f32 0.0, %v540
    %542 = vmatmul.bf16.gmra.mxu0 %v248
    %v543 = vpop.f32.mrf.mxu0
    %v544 = vadd.f32 0.0, %v543
    %v545 = vpop.f32.mrf.mxu0
    %v546 = vadd.f32 0.0, %v545
    %547 = vmatmul.bf16.gmra.mxu0 %v249
    %v548 = vpop.f32.mrf.mxu0
    %v549 = vadd.f32 0.0, %v548
    %v550 = vpop.f32.mrf.mxu0
    %v551 = vadd.f32 0.0, %v550
    %552 = vmatmul.bf16.gmra.mxu0 %v250
    %v553 = vpop.f32.mrf.mxu0
    %v554 = vadd.f32 0.0, %v553
    %v555 = vpop.f32.mrf.mxu0
    %v556 = vadd.f32 0.0, %v555
    %557 = vdwg.mxu0
    %s558 = sld [smem:[#allocation2 + $0x1]]
    %s559 = sadd.f32 %s558, 1.0
    %v560 = vstv %s559
    %v561 = vmul.f32 %v560, %v481
    %v562 = vmul.f32 %v560, %v482
    %v563 = vmul.f32 %v560, %v483
    %v564 = vmul.f32 %v560, %v484
    %v565 = vmul.f32 %v560, %v485
    %v566 = vmul.f32 %v560, %v486
    %v567 = vmul.f32 %v560, %v487
    %v568 = vmul.f32 %v560, %v488
    %v569 = vmul.f32 %v560, %v489
    %v570 = vmul.f32 %v560, %v490
    %v571 = vmul.f32 %v560, %v491
    %v572 = vmul.f32 %v560, %v492
    %v573 = vmul.f32 %v560, %v493
    %v574 = vmul.f32 %v560, %v494
    %v575 = vmul.f32 %v560, %v495
    %v576 = vmul.f32 %v560, %v496
    %v577 = vadd.f32 %v561, %v519
    %v578 = vadd.f32 %v562, %v521
    %v579 = vadd.f32 %v563, %v524
    %v580 = vadd.f32 %v564, %v526
    %v581 = vadd.f32 %v565, %v529
    %v582 = vadd.f32 %v566, %v531
    %v583 = vadd.f32 %v567, %v534
    %v584 = vadd.f32 %v568, %v536
    %v585 = vadd.f32 %v569, %v539
    %v586 = vadd.f32 %v570, %v541
    %v587 = vadd.f32 %v571, %v544
    %v588 = vadd.f32 %v572, %v546
    %v589 = vadd.f32 %v573, %v549
    %v590 = vadd.f32 %v574, %v551
    %v591 = vadd.f32 %v575, %v554
    %v592 = vadd.f32 %v576, %v556
    %v593 = vld [vmem:[%s5] sm:$0xf]
    %v594 = vld [vmem:[%s5 + $0x4] sm:$0xf]
    %v595 = vld [vmem:[%s5 + $0x8] sm:$0xf]
    %v596 = vld [vmem:[%s5 + $0xc] sm:$0xf]
    %v597 = vpack.c.bf16 %v578, %v577
    %v598 = vpack.c.bf16 %v580, %v579
    %v599 = vpack.c.bf16 %v582, %v581
    %v600 = vpack.c.bf16 %v584, %v583
    %v601 = vpack.c.bf16 %v586, %v585
    %v602 = vpack.c.bf16 %v588, %v587
    %v603 = vpack.c.bf16 %v590, %v589
    %v604 = vpack.c.bf16 %v592, %v591
    %v609 = vunpack.c.l.b16 %v593
    %v610 = vunpack.c.l.b16 %v594
    %v611 = vunpack.c.l.b16 %v595
    %v612 = vunpack.c.l.b16 %v596
    %v613 = vpack.c.b16 %v610, %v609
    %v614 = vpack.c.b16 %v612, %v611
    %v618 = vsel %vm326, %v597, 0
    %v621 = vsel %vm326, %v598, 0
    %v624 = vsel %vm326, %v599, 0
    %v627 = vsel %vm326, %v600, 0
    %v630 = vsel %vm326, %v601, 0
    %v633 = vsel %vm326, %v602, 0
    %v636 = vsel %vm326, %v603, 0
    %v639 = vsel %vm326, %v604, 0
    %641 = vmatpush.bf16.msra.mxu0 0
    %642 = vmatpush.bf16.msra.mxu0 0
    %643 = vmatpush.bf16.msra.mxu0 0
    %644 = vmatpush.bf16.msra.mxu0 0
    %645 = vmatpush.bf16.msra.mxu0 0
    %646 = vmatpush.bf16.msra.mxu0 0
    %647 = vmatpush.bf16.msra.mxu0 %v614
    %648 = vmatpush.bf16.msra.mxu0 %v613
    %649 = vmatmul.bf16.gmra.mxu0 %v618
    %v650 = vpop.f32.mrf.mxu0
    %v651 = vadd.f32 0.0, %v650
    %v652 = vpop.f32.mrf.mxu0
    %v653 = vadd.f32 0.0, %v652
    %654 = vmatmul.bf16.gmra.mxu0 %v621
    %v655 = vpop.f32.mrf.mxu0
    %v656 = vadd.f32 0.0, %v655
    %v657 = vpop.f32.mrf.mxu0
    %v658 = vadd.f32 0.0, %v657
    %659 = vmatmul.bf16.gmra.mxu0 %v624
    %v660 = vpop.f32.mrf.mxu0
    %v661 = vadd.f32 0.0, %v660
    %v662 = vpop.f32.mrf.mxu0
    %v663 = vadd.f32 0.0, %v662
    %664 = vmatmul.bf16.gmra.mxu0 %v627
    %v665 = vpop.f32.mrf.mxu0
    %v666 = vadd.f32 0.0, %v665
    %v667 = vpop.f32.mrf.mxu0
    %v668 = vadd.f32 0.0, %v667
    %669 = vmatmul.bf16.gmra.mxu0 %v630
    %v670 = vpop.f32.mrf.mxu0
    %v671 = vadd.f32 0.0, %v670
    %v672 = vpop.f32.mrf.mxu0
    %v673 = vadd.f32 0.0, %v672
    %674 = vmatmul.bf16.gmra.mxu0 %v633
    %v675 = vpop.f32.mrf.mxu0
    %v676 = vadd.f32 0.0, %v675
    %v677 = vpop.f32.mrf.mxu0
    %v678 = vadd.f32 0.0, %v677
    %679 = vmatmul.bf16.gmra.mxu0 %v636
    %v680 = vpop.f32.mrf.mxu0
    %v681 = vadd.f32 0.0, %v680
    %v682 = vpop.f32.mrf.mxu0
    %v683 = vadd.f32 0.0, %v682
    %684 = vmatmul.bf16.gmra.mxu0 %v639
    %v685 = vpop.f32.mrf.mxu0
    %v686 = vadd.f32 0.0, %v685
    %v687 = vpop.f32.mrf.mxu0
    %v688 = vadd.f32 0.0, %v687
    %689 = vdwg.mxu0
    %v690 = vld [vmem:[%s7 + $0x2] sm:$0x1]
    %v691 = vld [vmem:[%s7 + $0x3] sm:$0x1]
    %v692 = vsel %vm326, %v651, 0.0
    %v693 = vsel %vm326, %v653, 0.0
    %v694 = vadd.f32 %v692, %v693
    %v695 = vsel %vm326, %v656, 0.0
    %v696 = vadd.f32 %v694, %v695
    %v697 = vsel %vm326, %v658, 0.0
    %v698 = vadd.f32 %v696, %v697
    %v699 = vsel %vm326, %v661, 0.0
    %v700 = vadd.f32 %v698, %v699
    %v701 = vsel %vm326, %v663, 0.0
    %v702 = vadd.f32 %v700, %v701
    %v703 = vsel %vm326, %v666, 0.0
    %v704 = vadd.f32 %v702, %v703
    %v705 = vsel %vm326, %v668, 0.0
    %v706 = vadd.f32 %v704, %v705
    %v707 = vsel %vm326, %v671, 0.0
    %v708 = vadd.f32 %v706, %v707
    %v709 = vsel %vm326, %v673, 0.0
    %v710 = vadd.f32 %v708, %v709
    %v711 = vsel %vm326, %v676, 0.0
    %v712 = vadd.f32 %v710, %v711
    %v713 = vsel %vm326, %v678, 0.0
    %v714 = vadd.f32 %v712, %v713
    %v715 = vsel %vm326, %v681, 0.0
    %v716 = vadd.f32 %v714, %v715
    %v717 = vsel %vm326, %v683, 0.0
    %v718 = vadd.f32 %v716, %v717
    %v719 = vsel %vm326, %v686, 0.0
    %v720 = vadd.f32 %v718, %v719
    %v721 = vsel %vm326, %v688, 0.0
    %v722 = vadd.f32 %v720, %v721
    %v723 = vrot.slane %v722, 4
    %v724 = vadd.f32 %v722, %v723
    %v725 = vrot.slane %v724, 2
    %v726 = vadd.f32 %v724, %v725
    %v727 = vrot.slane %v726, 1
    %v728 = vadd.f32 %v726, %v727
    %v729 = vmul.f32 %v728, 0.0078125
    %v730 = vsub.f32 %v651, %v729
    %v731 = vsub.f32 %v653, %v729
    %v732 = vsub.f32 %v656, %v729
    %v733 = vsub.f32 %v658, %v729
    %v734 = vsub.f32 %v661, %v729
    %v735 = vsub.f32 %v663, %v729
    %v736 = vsub.f32 %v666, %v729
    %v737 = vsub.f32 %v668, %v729
    %v738 = vsub.f32 %v671, %v729
    %v739 = vsub.f32 %v673, %v729
    %v740 = vsub.f32 %v676, %v729
    %v741 = vsub.f32 %v678, %v729
    %v742 = vsub.f32 %v681, %v729
    %v743 = vsub.f32 %v683, %v729
    %v744 = vsub.f32 %v686, %v729
    %v745 = vsub.f32 %v688, %v729
    %v746 = vmul.f32 %v730, %v730
    %v747 = vmul.f32 %v731, %v731
    %v748 = vmul.f32 %v732, %v732
    %v749 = vmul.f32 %v733, %v733
    %v750 = vmul.f32 %v734, %v734
    %v751 = vmul.f32 %v735, %v735
    %v752 = vmul.f32 %v736, %v736
    %v753 = vmul.f32 %v737, %v737
    %v754 = vmul.f32 %v738, %v738
    %v755 = vmul.f32 %v739, %v739
    %v756 = vmul.f32 %v740, %v740
    %v757 = vmul.f32 %v741, %v741
    %v758 = vmul.f32 %v742, %v742
    %v759 = vmul.f32 %v743, %v743
    %v760 = vmul.f32 %v744, %v744
    %v761 = vmul.f32 %v745, %v745
    %v762 = vsel %vm326, %v746, 0.0
    %v763 = vsel %vm326, %v747, 0.0
    %v764 = vadd.f32 %v762, %v763
    %v765 = vsel %vm326, %v748, 0.0
    %v766 = vadd.f32 %v764, %v765
    %v767 = vsel %vm326, %v749, 0.0
    %v768 = vadd.f32 %v766, %v767
    %v769 = vsel %vm326, %v750, 0.0
    %v770 = vadd.f32 %v768, %v769
    %v771 = vsel %vm326, %v751, 0.0
    %v772 = vadd.f32 %v770, %v771
    %v773 = vsel %vm326, %v752, 0.0
    %v774 = vadd.f32 %v772, %v773
    %v775 = vsel %vm326, %v753, 0.0
    %v776 = vadd.f32 %v774, %v775
    %v777 = vsel %vm326, %v754, 0.0
    %v778 = vadd.f32 %v776, %v777
    %v779 = vsel %vm326, %v755, 0.0
    %v780 = vadd.f32 %v778, %v779
    %v781 = vsel %vm326, %v756, 0.0
    %v782 = vadd.f32 %v780, %v781
    %v783 = vsel %vm326, %v757, 0.0
    %v784 = vadd.f32 %v782, %v783
    %v785 = vsel %vm326, %v758, 0.0
    %v786 = vadd.f32 %v784, %v785
    %v787 = vsel %vm326, %v759, 0.0
    %v788 = vadd.f32 %v786, %v787
    %v789 = vsel %vm326, %v760, 0.0
    %v790 = vadd.f32 %v788, %v789
    %v791 = vsel %vm326, %v761, 0.0
    %v792 = vadd.f32 %v790, %v791
    %v793 = vrot.slane %v792, 4
    %v794 = vadd.f32 %v792, %v793
    %v795 = vrot.slane %v794, 2
    %v796 = vadd.f32 %v794, %v795
    %v797 = vrot.slane %v796, 1
    %v798 = vadd.f32 %v796, %v797
    %v799 = vmul.f32 %v798, 0.0078125
    %v800 = vadd.f32 %v799, 1e-05
    %v801 = vrsqrt.pop %v800
    %v802 = vmul.f32 %v801, %v800
    %v803 = vmul.f32 %v802, %v801
    %v804 = vmul.f32 0.5, %v803
    %v805 = vsub.f32 1.5, %v804
    %v806 = vmul.f32 %v801, %v805
    %vm807 = vweird.f32 %v800
    %vm808 = vweird.f32 %v801
    %vm809 = vmor %vm807, %vm808
    %v810 = vsel %vm809, %v801, %v806
    %v811 = vmul.f32 %v810, %v690
    %v812 = vperm.slane %v811, 0
    %v813 = vmul.f32 %v730, %v812
    %v814 = vmul.f32 %v731, %v812
    %v815 = vmul.f32 %v732, %v812
    %v816 = vmul.f32 %v733, %v812
    %v817 = vmul.f32 %v734, %v812
    %v818 = vmul.f32 %v735, %v812
    %v819 = vmul.f32 %v736, %v812
    %v820 = vmul.f32 %v737, %v812
    %v821 = vmul.f32 %v738, %v812
    %v822 = vmul.f32 %v739, %v812
    %v823 = vmul.f32 %v740, %v812
    %v824 = vmul.f32 %v741, %v812
    %v825 = vmul.f32 %v742, %v812
    %v826 = vmul.f32 %v743, %v812
    %v827 = vmul.f32 %v744, %v812
    %v828 = vmul.f32 %v745, %v812
    %v829 = vperm.slane %v691, 0
    %v830 = vadd.f32 %v813, %v829
    %v831 = vadd.f32 %v814, %v829
    %v832 = vadd.f32 %v815, %v829
    %v833 = vadd.f32 %v816, %v829
    %v834 = vadd.f32 %v817, %v829
    %v835 = vadd.f32 %v818, %v829
    %v836 = vadd.f32 %v819, %v829
    %v837 = vadd.f32 %v820, %v829
    %v838 = vadd.f32 %v821, %v829
    %v839 = vadd.f32 %v822, %v829
    %v840 = vadd.f32 %v823, %v829
    %v841 = vadd.f32 %v824, %v829
    %v842 = vadd.f32 %v825, %v829
    %v843 = vadd.f32 %v826, %v829
    %v844 = vadd.f32 %v827, %v829
    %v845 = vadd.f32 %v828, %v829
    %v846 = vmax.f32 %v830, 0.0
    %v847 = vmax.f32 %v831, 0.0
    %v848 = vmax.f32 %v832, 0.0
    %v849 = vmax.f32 %v833, 0.0
    %v850 = vmax.f32 %v834, 0.0
    %v851 = vmax.f32 %v835, 0.0
    %v852 = vmax.f32 %v836, 0.0
    %v853 = vmax.f32 %v837, 0.0
    %v854 = vmax.f32 %v838, 0.0
    %v855 = vmax.f32 %v839, 0.0
    %v856 = vmax.f32 %v840, 0.0
    %v857 = vmax.f32 %v841, 0.0
    %v858 = vmax.f32 %v842, 0.0
    %v859 = vmax.f32 %v843, 0.0
    %v860 = vmax.f32 %v844, 0.0
    %v861 = vmax.f32 %v845, 0.0
    %v862 = vld [vmem:[%s6 + $0x10] sm:$0xf]
    %v863 = vld [vmem:[%s6 + $0x14] sm:$0xf]
    %v864 = vld [vmem:[%s6 + $0x18] sm:$0xf]
    %v865 = vld [vmem:[%s6 + $0x1c] sm:$0xf]
    %v866 = vpack.c.bf16 %v847, %v846
    %v867 = vpack.c.bf16 %v849, %v848
    %v868 = vpack.c.bf16 %v851, %v850
    %v869 = vpack.c.bf16 %v853, %v852
    %v870 = vpack.c.bf16 %v855, %v854
    %v871 = vpack.c.bf16 %v857, %v856
    %v872 = vpack.c.bf16 %v859, %v858
    %v873 = vpack.c.bf16 %v861, %v860
    %v878 = vunpack.c.l.b16 %v862
    %v879 = vunpack.c.l.b16 %v863
    %v880 = vunpack.c.l.b16 %v864
    %v881 = vunpack.c.l.b16 %v865
    %v882 = vpack.c.b16 %v879, %v878
    %v883 = vpack.c.b16 %v881, %v880
    %v887 = vsel %vm326, %v866, 0
    %v890 = vsel %vm326, %v867, 0
    %v893 = vsel %vm326, %v868, 0
    %v896 = vsel %vm326, %v869, 0
    %v899 = vsel %vm326, %v870, 0
    %v902 = vsel %vm326, %v871, 0
    %v905 = vsel %vm326, %v872, 0
    %v908 = vsel %vm326, %v873, 0
    %910 = vmatpush.bf16.msra.mxu0 0
    %911 = vmatpush.bf16.msra.mxu0 0
    %912 = vmatpush.bf16.msra.mxu0 0
    %913 = vmatpush.bf16.msra.mxu0 0
    %914 = vmatpush.bf16.msra.mxu0 0
    %915 = vmatpush.bf16.msra.mxu0 0
    %916 = vmatpush.bf16.msra.mxu0 %v883
    %917 = vmatpush.bf16.msra.mxu0 %v882
    %918 = vmatmul.bf16.gmra.mxu0 %v887
    %v919 = vpop.f32.mrf.mxu0
    %v920 = vadd.f32 0.0, %v919
    %v921 = vpop.f32.mrf.mxu0
    %v922 = vadd.f32 0.0, %v921
    %923 = vmatmul.bf16.gmra.mxu0 %v890
    %v924 = vpop.f32.mrf.mxu0
    %v925 = vadd.f32 0.0, %v924
    %v926 = vpop.f32.mrf.mxu0
    %v927 = vadd.f32 0.0, %v926
    %928 = vmatmul.bf16.gmra.mxu0 %v893
    %v929 = vpop.f32.mrf.mxu0
    %v930 = vadd.f32 0.0, %v929
    %v931 = vpop.f32.mrf.mxu0
    %v932 = vadd.f32 0.0, %v931
    %933 = vmatmul.bf16.gmra.mxu0 %v896
    %v934 = vpop.f32.mrf.mxu0
    %v935 = vadd.f32 0.0, %v934
    %v936 = vpop.f32.mrf.mxu0
    %v937 = vadd.f32 0.0, %v936
    %938 = vmatmul.bf16.gmra.mxu0 %v899
    %v939 = vpop.f32.mrf.mxu0
    %v940 = vadd.f32 0.0, %v939
    %v941 = vpop.f32.mrf.mxu0
    %v942 = vadd.f32 0.0, %v941
    %943 = vmatmul.bf16.gmra.mxu0 %v902
    %v944 = vpop.f32.mrf.mxu0
    %v945 = vadd.f32 0.0, %v944
    %v946 = vpop.f32.mrf.mxu0
    %v947 = vadd.f32 0.0, %v946
    %948 = vmatmul.bf16.gmra.mxu0 %v905
    %v949 = vpop.f32.mrf.mxu0
    %v950 = vadd.f32 0.0, %v949
    %v951 = vpop.f32.mrf.mxu0
    %v952 = vadd.f32 0.0, %v951
    %953 = vmatmul.bf16.gmra.mxu0 %v908
    %v954 = vpop.f32.mrf.mxu0
    %v955 = vadd.f32 0.0, %v954
    %v956 = vpop.f32.mrf.mxu0
    %v957 = vadd.f32 0.0, %v956
    %958 = vdwg.mxu0
    %v963 = vunpack.c.l.b16 %v497
    %v964 = vunpack.c.l.b16 %v498
    %v965 = vunpack.c.l.b16 %v499
    %v966 = vunpack.c.l.b16 %v500
    %v967 = vpack.c.b16 %v964, %v963
    %v968 = vpack.c.b16 %v966, %v965
    %v972 = vsel %vm326, %v501, 0
    %v975 = vsel %vm326, %v502, 0
    %v978 = vsel %vm326, %v503, 0
    %v981 = vsel %vm326, %v504, 0
    %v984 = vsel %vm326, %v505, 0
    %v987 = vsel %vm326, %v506, 0
    %v990 = vsel %vm326, %v507, 0
    %v993 = vsel %vm326, %v508, 0
    %995 = vmatpush.bf16.msra.mxu0 0
    %996 = vmatpush.bf16.msra.mxu0 0
    %997 = vmatpush.bf16.msra.mxu0 0
    %998 = vmatpush.bf16.msra.mxu0 0
    %999 = vmatpush.bf16.msra.mxu0 0
    %1000 = vmatpush.bf16.msra.mxu0 0
    %1001 = vmatpush.bf16.msra.mxu0 %v968
    %1002 = vmatpush.bf16.msra.mxu0 %v967
    %1003 = vmatmul.bf16.gmra.mxu0 %v972
    %v1004 = vpop.f32.mrf.mxu0
    %v1005 = vadd.f32 %v920, %v1004
    %v1006 = vpop.f32.mrf.mxu0
    %v1007 = vadd.f32 %v922, %v1006
    %1008 = vmatmul.bf16.gmra.mxu0 %v975
    %v1009 = vpop.f32.mrf.mxu0
    %v1010 = vadd.f32 %v925, %v1009
    %v1011 = vpop.f32.mrf.mxu0
    %v1012 = vadd.f32 %v927, %v1011
    %1013 = vmatmul.bf16.gmra.mxu0 %v978
    %v1014 = vpop.f32.mrf.mxu0
    %v1015 = vadd.f32 %v930, %v1014
    %v1016 = vpop.f32.mrf.mxu0
    %v1017 = vadd.f32 %v932, %v1016
    %1018 = vmatmul.bf16.gmra.mxu0 %v981
    %v1019 = vpop.f32.mrf.mxu0
    %v1020 = vadd.f32 %v935, %v1019
    %v1021 = vpop.f32.mrf.mxu0
    %v1022 = vadd.f32 %v937, %v1021
    %1023 = vmatmul.bf16.gmra.mxu0 %v984
    %v1024 = vpop.f32.mrf.mxu0
    %v1025 = vadd.f32 %v940, %v1024
    %v1026 = vpop.f32.mrf.mxu0
    %v1027 = vadd.f32 %v942, %v1026
    %1028 = vmatmul.bf16.gmra.mxu0 %v987
    %v1029 = vpop.f32.mrf.mxu0
    %v1030 = vadd.f32 %v945, %v1029
    %v1031 = vpop.f32.mrf.mxu0
    %v1032 = vadd.f32 %v947, %v1031
    %1033 = vmatmul.bf16.gmra.mxu0 %v990
    %v1034 = vpop.f32.mrf.mxu0
    %v1035 = vadd.f32 %v950, %v1034
    %v1036 = vpop.f32.mrf.mxu0
    %v1037 = vadd.f32 %v952, %v1036
    %1038 = vmatmul.bf16.gmra.mxu0 %v993
    %v1039 = vpop.f32.mrf.mxu0
    %v1040 = vadd.f32 %v955, %v1039
    %v1041 = vpop.f32.mrf.mxu0
    %v1042 = vadd.f32 %v957, %v1041
    %1043 = vdwg.mxu0
    %1044 = vmatpush.bf16.msra.mxu0 %v873
    %1045 = vmatpush.bf16.msra.mxu0 %v872
    %1046 = vmatpush.bf16.msra.mxu0 %v871
    %1047 = vmatpush.bf16.msra.mxu0 %v870
    %1048 = vmatpush.bf16.msra.mxu0 %v869
    %1049 = vmatpush.bf16.msra.mxu0 %v868
    %1050 = vmatpush.bf16.msra.mxu0 %v867
    %1051 = vmatpush.bf16.msra.mxu0 %v866
    %1052 = vmatmul.bf16.gmra.mxu0 %v243
    %v1053 = vpop.f32.mrf.mxu0
    %v1054 = vadd.f32 0.0, %v1053
    %v1055 = vpop.f32.mrf.mxu0
    %v1056 = vadd.f32 0.0, %v1055
    %1057 = vmatmul.bf16.gmra.mxu0 %v244
    %v1058 = vpop.f32.mrf.mxu0
    %v1059 = vadd.f32 0.0, %v1058
    %v1060 = vpop.f32.mrf.mxu0
    %v1061 = vadd.f32 0.0, %v1060
    %1062 = vmatmul.bf16.gmra.mxu0 %v245
    %v1063 = vpop.f32.mrf.mxu0
    %v1064 = vadd.f32 0.0, %v1063
    %v1065 = vpop.f32.mrf.mxu0
    %v1066 = vadd.f32 0.0, %v1065
    %1067 = vmatmul.bf16.gmra.mxu0 %v246
    %v1068 = vpop.f32.mrf.mxu0
    %v1069 = vadd.f32 0.0, %v1068
    %v1070 = vpop.f32.mrf.mxu0
    %v1071 = vadd.f32 0.0, %v1070
    %1072 = vmatmul.bf16.gmra.mxu0 %v247
    %v1073 = vpop.f32.mrf.mxu0
    %v1074 = vadd.f32 0.0, %v1073
    %v1075 = vpop.f32.mrf.mxu0
    %v1076 = vadd.f32 0.0, %v1075
    %1077 = vmatmul.bf16.gmra.mxu0 %v248
    %v1078 = vpop.f32.mrf.mxu0
    %v1079 = vadd.f32 0.0, %v1078
    %v1080 = vpop.f32.mrf.mxu0
    %v1081 = vadd.f32 0.0, %v1080
    %1082 = vmatmul.bf16.gmra.mxu0 %v249
    %v1083 = vpop.f32.mrf.mxu0
    %v1084 = vadd.f32 0.0, %v1083
    %v1085 = vpop.f32.mrf.mxu0
    %v1086 = vadd.f32 0.0, %v1085
    %1087 = vmatmul.bf16.gmra.mxu0 %v250
    %v1088 = vpop.f32.mrf.mxu0
    %v1089 = vadd.f32 0.0, %v1088
    %v1090 = vpop.f32.mrf.mxu0
    %v1091 = vadd.f32 0.0, %v1090
    %1092 = vdwg.mxu0
    %s1093 = sld [smem:[#allocation2 + $0x2]]
    %s1094 = sadd.f32 %s1093, 1.0
    %v1095 = vstv %s1094
    %v1096 = vmul.f32 %v1095, %v846
    %v1097 = vmul.f32 %v1095, %v847
    %v1098 = vmul.f32 %v1095, %v848
    %v1099 = vmul.f32 %v1095, %v849
    %v1100 = vmul.f32 %v1095, %v850
    %v1101 = vmul.f32 %v1095, %v851
    %v1102 = vmul.f32 %v1095, %v852
    %v1103 = vmul.f32 %v1095, %v853
    %v1104 = vmul.f32 %v1095, %v854
    %v1105 = vmul.f32 %v1095, %v855
    %v1106 = vmul.f32 %v1095, %v856
    %v1107 = vmul.f32 %v1095, %v857
    %v1108 = vmul.f32 %v1095, %v858
    %v1109 = vmul.f32 %v1095, %v859
    %v1110 = vmul.f32 %v1095, %v860
    %v1111 = vmul.f32 %v1095, %v861
    %v1112 = vadd.f32 %v1096, %v1054
    %v1113 = vadd.f32 %v1097, %v1056
    %v1114 = vadd.f32 %v1098, %v1059
    %v1115 = vadd.f32 %v1099, %v1061
    %v1116 = vadd.f32 %v1100, %v1064
    %v1117 = vadd.f32 %v1101, %v1066
    %v1118 = vadd.f32 %v1102, %v1069
    %v1119 = vadd.f32 %v1103, %v1071
    %v1120 = vadd.f32 %v1104, %v1074
    %v1121 = vadd.f32 %v1105, %v1076
    %v1122 = vadd.f32 %v1106, %v1079
    %v1123 = vadd.f32 %v1107, %v1081
    %v1124 = vadd.f32 %v1108, %v1084
    %v1125 = vadd.f32 %v1109, %v1086
    %v1126 = vadd.f32 %v1110, %v1089
    %v1127 = vadd.f32 %v1111, %v1091
    %s1128 = scalar_lea.vmem %s5, 16
    %v1129 = vld [vmem:[%s1128] sm:$0xf]
    %v1130 = vld [vmem:[%s1128 + $0x4] sm:$0xf]
    %v1131 = vld [vmem:[%s1128 + $0x8] sm:$0xf]
    %v1132 = vld [vmem:[%s1128 + $0xc] sm:$0xf]
    %v1133 = vpack.c.bf16 %v1113, %v1112
    %v1134 = vpack.c.bf16 %v1115, %v1114
    %v1135 = vpack.c.bf16 %v1117, %v1116
    %v1136 = vpack.c.bf16 %v1119, %v1118
    %v1137 = vpack.c.bf16 %v1121, %v1120
    %v1138 = vpack.c.bf16 %v1123, %v1122
    %v1139 = vpack.c.bf16 %v1125, %v1124
    %v1140 = vpack.c.bf16 %v1127, %v1126
    %v1145 = vunpack.c.l.b16 %v1129
    %v1146 = vunpack.c.l.b16 %v1130
    %v1147 = vunpack.c.l.b16 %v1131
    %v1148 = vunpack.c.l.b16 %v1132
    %v1149 = vpack.c.b16 %v1146, %v1145
    %v1150 = vpack.c.b16 %v1148, %v1147
    %v1154 = vsel %vm326, %v1133, 0
    %v1157 = vsel %vm326, %v1134, 0
    %v1160 = vsel %vm326, %v1135, 0
    %v1163 = vsel %vm326, %v1136, 0
    %v1166 = vsel %vm326, %v1137, 0
    %v1169 = vsel %vm326, %v1138, 0
    %v1172 = vsel %vm326, %v1139, 0
    %v1175 = vsel %vm326, %v1140, 0
    %1177 = vmatpush.bf16.msra.mxu0 0
    %1178 = vmatpush.bf16.msra.mxu0 0
    %1179 = vmatpush.bf16.msra.mxu0 0
    %1180 = vmatpush.bf16.msra.mxu0 0
    %1181 = vmatpush.bf16.msra.mxu0 0
    %1182 = vmatpush.bf16.msra.mxu0 0
    %1183 = vmatpush.bf16.msra.mxu0 %v1150
    %1184 = vmatpush.bf16.msra.mxu0 %v1149
    %1185 = vmatmul.bf16.gmra.mxu0 %v1154
    %v1186 = vpop.f32.mrf.mxu0
    %v1187 = vadd.f32 0.0, %v1186
    %v1188 = vpop.f32.mrf.mxu0
    %v1189 = vadd.f32 0.0, %v1188
    %1190 = vmatmul.bf16.gmra.mxu0 %v1157
    %v1191 = vpop.f32.mrf.mxu0
    %v1192 = vadd.f32 0.0, %v1191
    %v1193 = vpop.f32.mrf.mxu0
    %v1194 = vadd.f32 0.0, %v1193
    %1195 = vmatmul.bf16.gmra.mxu0 %v1160
    %v1196 = vpop.f32.mrf.mxu0
    %v1197 = vadd.f32 0.0, %v1196
    %v1198 = vpop.f32.mrf.mxu0
    %v1199 = vadd.f32 0.0, %v1198
    %1200 = vmatmul.bf16.gmra.mxu0 %v1163
    %v1201 = vpop.f32.mrf.mxu0
    %v1202 = vadd.f32 0.0, %v1201
    %v1203 = vpop.f32.mrf.mxu0
    %v1204 = vadd.f32 0.0, %v1203
    %1205 = vmatmul.bf16.gmra.mxu0 %v1166
    %v1206 = vpop.f32.mrf.mxu0
    %v1207 = vadd.f32 0.0, %v1206
    %v1208 = vpop.f32.mrf.mxu0
    %v1209 = vadd.f32 0.0, %v1208
    %1210 = vmatmul.bf16.gmra.mxu0 %v1169
    %v1211 = vpop.f32.mrf.mxu0
    %v1212 = vadd.f32 0.0, %v1211
    %v1213 = vpop.f32.mrf.mxu0
    %v1214 = vadd.f32 0.0, %v1213
    %1215 = vmatmul.bf16.gmra.mxu0 %v1172
    %v1216 = vpop.f32.mrf.mxu0
    %v1217 = vadd.f32 0.0, %v1216
    %v1218 = vpop.f32.mrf.mxu0
    %v1219 = vadd.f32 0.0, %v1218
    %1220 = vmatmul.bf16.gmra.mxu0 %v1175
    %v1221 = vpop.f32.mrf.mxu0
    %v1222 = vadd.f32 0.0, %v1221
    %v1223 = vpop.f32.mrf.mxu0
    %v1224 = vadd.f32 0.0, %v1223
    %1225 = vdwg.mxu0
    %v1226 = vld [vmem:[%s7 + $0x4] sm:$0x1]
    %v1227 = vld [vmem:[%s7 + $0x5] sm:$0x1]
    %v1228 = vsel %vm326, %v1187, 0.0
    %v1229 = vsel %vm326, %v1189, 0.0
    %v1230 = vadd.f32 %v1228, %v1229
    %v1231 = vsel %vm326, %v1192, 0.0
    %v1232 = vadd.f32 %v1230, %v1231
    %v1233 = vsel %vm326, %v1194, 0.0
    %v1234 = vadd.f32 %v1232, %v1233
    %v1235 = vsel %vm326, %v1197, 0.0
    %v1236 = vadd.f32 %v1234, %v1235
    %v1237 = vsel %vm326, %v1199, 0.0
    %v1238 = vadd.f32 %v1236, %v1237
    %v1239 = vsel %vm326, %v1202, 0.0
    %v1240 = vadd.f32 %v1238, %v1239
    %v1241 = vsel %vm326, %v1204, 0.0
    %v1242 = vadd.f32 %v1240, %v1241
    %v1243 = vsel %vm326, %v1207, 0.0
    %v1244 = vadd.f32 %v1242, %v1243
    %v1245 = vsel %vm326, %v1209, 0.0
    %v1246 = vadd.f32 %v1244, %v1245
    %v1247 = vsel %vm326, %v1212, 0.0
    %v1248 = vadd.f32 %v1246, %v1247
    %v1249 = vsel %vm326, %v1214, 0.0
    %v1250 = vadd.f32 %v1248, %v1249
    %v1251 = vsel %vm326, %v1217, 0.0
    %v1252 = vadd.f32 %v1250, %v1251
    %v1253 = vsel %vm326, %v1219, 0.0
    %v1254 = vadd.f32 %v1252, %v1253
    %v1255 = vsel %vm326, %v1222, 0.0
    %v1256 = vadd.f32 %v1254, %v1255
    %v1257 = vsel %vm326, %v1224, 0.0
    %v1258 = vadd.f32 %v1256, %v1257
    %v1259 = vrot.slane %v1258, 4
    %v1260 = vadd.f32 %v1258, %v1259
    %v1261 = vrot.slane %v1260, 2
    %v1262 = vadd.f32 %v1260, %v1261
    %v1263 = vrot.slane %v1262, 1
    %v1264 = vadd.f32 %v1262, %v1263
    %v1265 = vmul.f32 %v1264, 0.0078125
    %v1266 = vsub.f32 %v1187, %v1265
    %v1267 = vsub.f32 %v1189, %v1265
    %v1268 = vsub.f32 %v1192, %v1265
    %v1269 = vsub.f32 %v1194, %v1265
    %v1270 = vsub.f32 %v1197, %v1265
    %v1271 = vsub.f32 %v1199, %v1265
    %v1272 = vsub.f32 %v1202, %v1265
    %v1273 = vsub.f32 %v1204, %v1265
    %v1274 = vsub.f32 %v1207, %v1265
    %v1275 = vsub.f32 %v1209, %v1265
    %v1276 = vsub.f32 %v1212, %v1265
    %v1277 = vsub.f32 %v1214, %v1265
    %v1278 = vsub.f32 %v1217, %v1265
    %v1279 = vsub.f32 %v1219, %v1265
    %v1280 = vsub.f32 %v1222, %v1265
    %v1281 = vsub.f32 %v1224, %v1265
    %v1282 = vmul.f32 %v1266, %v1266
    %v1283 = vmul.f32 %v1267, %v1267
    %v1284 = vmul.f32 %v1268, %v1268
    %v1285 = vmul.f32 %v1269, %v1269
    %v1286 = vmul.f32 %v1270, %v1270
    %v1287 = vmul.f32 %v1271, %v1271
    %v1288 = vmul.f32 %v1272, %v1272
    %v1289 = vmul.f32 %v1273, %v1273
    %v1290 = vmul.f32 %v1274, %v1274
    %v1291 = vmul.f32 %v1275, %v1275
    %v1292 = vmul.f32 %v1276, %v1276
    %v1293 = vmul.f32 %v1277, %v1277
    %v1294 = vmul.f32 %v1278, %v1278
    %v1295 = vmul.f32 %v1279, %v1279
    %v1296 = vmul.f32 %v1280, %v1280
    %v1297 = vmul.f32 %v1281, %v1281
    %v1298 = vsel %vm326, %v1282, 0.0
    %v1299 = vsel %vm326, %v1283, 0.0
    %v1300 = vadd.f32 %v1298, %v1299
    %v1301 = vsel %vm326, %v1284, 0.0
    %v1302 = vadd.f32 %v1300, %v1301
    %v1303 = vsel %vm326, %v1285, 0.0
    %v1304 = vadd.f32 %v1302, %v1303
    %v1305 = vsel %vm326, %v1286, 0.0
    %v1306 = vadd.f32 %v1304, %v1305
    %v1307 = vsel %vm326, %v1287, 0.0
    %v1308 = vadd.f32 %v1306, %v1307
    %v1309 = vsel %vm326, %v1288, 0.0
    %v1310 = vadd.f32 %v1308, %v1309
    %v1311 = vsel %vm326, %v1289, 0.0
    %v1312 = vadd.f32 %v1310, %v1311
    %v1313 = vsel %vm326, %v1290, 0.0
    %v1314 = vadd.f32 %v1312, %v1313
    %v1315 = vsel %vm326, %v1291, 0.0
    %v1316 = vadd.f32 %v1314, %v1315
    %v1317 = vsel %vm326, %v1292, 0.0
    %v1318 = vadd.f32 %v1316, %v1317
    %v1319 = vsel %vm326, %v1293, 0.0
    %v1320 = vadd.f32 %v1318, %v1319
    %v1321 = vsel %vm326, %v1294, 0.0
    %v1322 = vadd.f32 %v1320, %v1321
    %v1323 = vsel %vm326, %v1295, 0.0
    %v1324 = vadd.f32 %v1322, %v1323
    %v1325 = vsel %vm326, %v1296, 0.0
    %v1326 = vadd.f32 %v1324, %v1325
    %v1327 = vsel %vm326, %v1297, 0.0
    %v1328 = vadd.f32 %v1326, %v1327
    %v1329 = vrot.slane %v1328, 4
    %v1330 = vadd.f32 %v1328, %v1329
    %v1331 = vrot.slane %v1330, 2
    %v1332 = vadd.f32 %v1330, %v1331
    %v1333 = vrot.slane %v1332, 1
    %v1334 = vadd.f32 %v1332, %v1333
    %v1335 = vmul.f32 %v1334, 0.0078125
    %v1336 = vadd.f32 %v1335, 1e-05
    %v1337 = vrsqrt.pop %v1336
    %v1338 = vmul.f32 %v1337, %v1336
    %v1339 = vmul.f32 %v1338, %v1337
    %v1340 = vmul.f32 0.5, %v1339
    %v1341 = vsub.f32 1.5, %v1340
    %v1342 = vmul.f32 %v1337, %v1341
    %vm1343 = vweird.f32 %v1336
    %vm1344 = vweird.f32 %v1337
    %vm1345 = vmor %vm1343, %vm1344
    %v1346 = vsel %vm1345, %v1337, %v1342
    %v1347 = vmul.f32 %v1346, %v1226
    %v1348 = vperm.slane %v1347, 0
    %v1349 = vmul.f32 %v1266, %v1348
    %v1350 = vmul.f32 %v1267, %v1348
    %v1351 = vmul.f32 %v1268, %v1348
    %v1352 = vmul.f32 %v1269, %v1348
    %v1353 = vmul.f32 %v1270, %v1348
    %v1354 = vmul.f32 %v1271, %v1348
    %v1355 = vmul.f32 %v1272, %v1348
    %v1356 = vmul.f32 %v1273, %v1348
    %v1357 = vmul.f32 %v1274, %v1348
    %v1358 = vmul.f32 %v1275, %v1348
    %v1359 = vmul.f32 %v1276, %v1348
    %v1360 = vmul.f32 %v1277, %v1348
    %v1361 = vmul.f32 %v1278, %v1348
    %v1362 = vmul.f32 %v1279, %v1348
    %v1363 = vmul.f32 %v1280, %v1348
    %v1364 = vmul.f32 %v1281, %v1348
    %v1365 = vperm.slane %v1227, 0
    %v1366 = vadd.f32 %v1349, %v1365
    %v1367 = vadd.f32 %v1350, %v1365
    %v1368 = vadd.f32 %v1351, %v1365
    %v1369 = vadd.f32 %v1352, %v1365
    %v1370 = vadd.f32 %v1353, %v1365
    %v1371 = vadd.f32 %v1354, %v1365
    %v1372 = vadd.f32 %v1355, %v1365
    %v1373 = vadd.f32 %v1356, %v1365
    %v1374 = vadd.f32 %v1357, %v1365
    %v1375 = vadd.f32 %v1358, %v1365
    %v1376 = vadd.f32 %v1359, %v1365
    %v1377 = vadd.f32 %v1360, %v1365
    %v1378 = vadd.f32 %v1361, %v1365
    %v1379 = vadd.f32 %v1362, %v1365
    %v1380 = vadd.f32 %v1363, %v1365
    %v1381 = vadd.f32 %v1364, %v1365
    %v1382 = vmax.f32 %v1366, 0.0
    %v1383 = vmax.f32 %v1367, 0.0
    %v1384 = vmax.f32 %v1368, 0.0
    %v1385 = vmax.f32 %v1369, 0.0
    %v1386 = vmax.f32 %v1370, 0.0
    %v1387 = vmax.f32 %v1371, 0.0
    %v1388 = vmax.f32 %v1372, 0.0
    %v1389 = vmax.f32 %v1373, 0.0
    %v1390 = vmax.f32 %v1374, 0.0
    %v1391 = vmax.f32 %v1375, 0.0
    %v1392 = vmax.f32 %v1376, 0.0
    %v1393 = vmax.f32 %v1377, 0.0
    %v1394 = vmax.f32 %v1378, 0.0
    %v1395 = vmax.f32 %v1379, 0.0
    %v1396 = vmax.f32 %v1380, 0.0
    %v1397 = vmax.f32 %v1381, 0.0
    %v1398 = vld [vmem:[%s6 + $0x20] sm:$0xf]
    %v1399 = vld [vmem:[%s6 + $0x24] sm:$0xf]
    %v1400 = vld [vmem:[%s6 + $0x28] sm:$0xf]
    %v1401 = vld [vmem:[%s6 + $0x2c] sm:$0xf]
    %v1402 = vpack.c.bf16 %v1383, %v1382
    %v1403 = vpack.c.bf16 %v1385, %v1384
    %v1404 = vpack.c.bf16 %v1387, %v1386
    %v1405 = vpack.c.bf16 %v1389, %v1388
    %v1406 = vpack.c.bf16 %v1391, %v1390
    %v1407 = vpack.c.bf16 %v1393, %v1392
    %v1408 = vpack.c.bf16 %v1395, %v1394
    %v1409 = vpack.c.bf16 %v1397, %v1396
    %v1414 = vunpack.c.l.b16 %v1398
    %v1415 = vunpack.c.l.b16 %v1399
    %v1416 = vunpack.c.l.b16 %v1400
    %v1417 = vunpack.c.l.b16 %v1401
    %v1418 = vpack.c.b16 %v1415, %v1414
    %v1419 = vpack.c.b16 %v1417, %v1416
    %v1423 = vsel %vm326, %v1402, 0
    %v1426 = vsel %vm326, %v1403, 0
    %v1429 = vsel %vm326, %v1404, 0
    %v1432 = vsel %vm326, %v1405, 0
    %v1435 = vsel %vm326, %v1406, 0
    %v1438 = vsel %vm326, %v1407, 0
    %v1441 = vsel %vm326, %v1408, 0
    %v1444 = vsel %vm326, %v1409, 0
    %1446 = vmatpush.bf16.msra.mxu0 0
    %1447 = vmatpush.bf16.msra.mxu0 0
    %1448 = vmatpush.bf16.msra.mxu0 0
    %1449 = vmatpush.bf16.msra.mxu0 0
    %1450 = vmatpush.bf16.msra.mxu0 0
    %1451 = vmatpush.bf16.msra.mxu0 0
    %1452 = vmatpush.bf16.msra.mxu0 %v1419
    %1453 = vmatpush.bf16.msra.mxu0 %v1418
    %1454 = vmatmul.bf16.gmra.mxu0 %v1423
    %v1455 = vpop.f32.mrf.mxu0
    %v1456 = vadd.f32 0.0, %v1455
    %v1457 = vpop.f32.mrf.mxu0
    %v1458 = vadd.f32 0.0, %v1457
    %1459 = vmatmul.bf16.gmra.mxu0 %v1426
    %v1460 = vpop.f32.mrf.mxu0
    %v1461 = vadd.f32 0.0, %v1460
    %v1462 = vpop.f32.mrf.mxu0
    %v1463 = vadd.f32 0.0, %v1462
    %1464 = vmatmul.bf16.gmra.mxu0 %v1429
    %v1465 = vpop.f32.mrf.mxu0
    %v1466 = vadd.f32 0.0, %v1465
    %v1467 = vpop.f32.mrf.mxu0
    %v1468 = vadd.f32 0.0, %v1467
    %1469 = vmatmul.bf16.gmra.mxu0 %v1432
    %v1470 = vpop.f32.mrf.mxu0
    %v1471 = vadd.f32 0.0, %v1470
    %v1472 = vpop.f32.mrf.mxu0
    %v1473 = vadd.f32 0.0, %v1472
    %1474 = vmatmul.bf16.gmra.mxu0 %v1435
    %v1475 = vpop.f32.mrf.mxu0
    %v1476 = vadd.f32 0.0, %v1475
    %v1477 = vpop.f32.mrf.mxu0
    %v1478 = vadd.f32 0.0, %v1477
    %1479 = vmatmul.bf16.gmra.mxu0 %v1438
    %v1480 = vpop.f32.mrf.mxu0
    %v1481 = vadd.f32 0.0, %v1480
    %v1482 = vpop.f32.mrf.mxu0
    %v1483 = vadd.f32 0.0, %v1482
    %1484 = vmatmul.bf16.gmra.mxu0 %v1441
    %v1485 = vpop.f32.mrf.mxu0
    %v1486 = vadd.f32 0.0, %v1485
    %v1487 = vpop.f32.mrf.mxu0
    %v1488 = vadd.f32 0.0, %v1487
    %1489 = vmatmul.bf16.gmra.mxu0 %v1444
    %v1490 = vpop.f32.mrf.mxu0
    %v1491 = vadd.f32 0.0, %v1490
    %v1492 = vpop.f32.mrf.mxu0
    %v1493 = vadd.f32 0.0, %v1492
    %1494 = vdwg.mxu0
    %v1495 = vadd.f32 %v1005, %v1456
    %v1496 = vadd.f32 %v1007, %v1458
    %v1497 = vadd.f32 %v1010, %v1461
    %v1498 = vadd.f32 %v1012, %v1463
    %v1499 = vadd.f32 %v1015, %v1466
    %v1500 = vadd.f32 %v1017, %v1468
    %v1501 = vadd.f32 %v1020, %v1471
    %v1502 = vadd.f32 %v1022, %v1473
    %v1503 = vadd.f32 %v1025, %v1476
    %v1504 = vadd.f32 %v1027, %v1478
    %v1505 = vadd.f32 %v1030, %v1481
    %v1506 = vadd.f32 %v1032, %v1483
    %v1507 = vadd.f32 %v1035, %v1486
    %v1508 = vadd.f32 %v1037, %v1488
    %v1509 = vadd.f32 %v1040, %v1491
    %v1510 = vadd.f32 %v1042, %v1493
    %v1511 = vld [vmem:[%s7 + $0x6] sm:$0x1]
    %v1512 = vld [vmem:[%s7 + $0x7] sm:$0x1]
    %v1513 = vsel %vm326, %v1495, 0.0
    %v1514 = vsel %vm326, %v1496, 0.0
    %v1515 = vadd.f32 %v1513, %v1514
    %v1516 = vsel %vm326, %v1497, 0.0
    %v1517 = vadd.f32 %v1515, %v1516
    %v1518 = vsel %vm326, %v1498, 0.0
    %v1519 = vadd.f32 %v1517, %v1518
    %v1520 = vsel %vm326, %v1499, 0.0
    %v1521 = vadd.f32 %v1519, %v1520
    %v1522 = vsel %vm326, %v1500, 0.0
    %v1523 = vadd.f32 %v1521, %v1522
    %v1524 = vsel %vm326, %v1501, 0.0
    %v1525 = vadd.f32 %v1523, %v1524
    %v1526 = vsel %vm326, %v1502, 0.0
    %v1527 = vadd.f32 %v1525, %v1526
    %v1528 = vsel %vm326, %v1503, 0.0
    %v1529 = vadd.f32 %v1527, %v1528
    %v1530 = vsel %vm326, %v1504, 0.0
    %v1531 = vadd.f32 %v1529, %v1530
    %v1532 = vsel %vm326, %v1505, 0.0
    %v1533 = vadd.f32 %v1531, %v1532
    %v1534 = vsel %vm326, %v1506, 0.0
    %v1535 = vadd.f32 %v1533, %v1534
    %v1536 = vsel %vm326, %v1507, 0.0
    %v1537 = vadd.f32 %v1535, %v1536
    %v1538 = vsel %vm326, %v1508, 0.0
    %v1539 = vadd.f32 %v1537, %v1538
    %v1540 = vsel %vm326, %v1509, 0.0
    %v1541 = vadd.f32 %v1539, %v1540
    %v1542 = vsel %vm326, %v1510, 0.0
    %v1543 = vadd.f32 %v1541, %v1542
    %v1544 = vrot.slane %v1543, 4
    %v1545 = vadd.f32 %v1543, %v1544
    %v1546 = vrot.slane %v1545, 2
    %v1547 = vadd.f32 %v1545, %v1546
    %v1548 = vrot.slane %v1547, 1
    %v1549 = vadd.f32 %v1547, %v1548
    %v1550 = vmul.f32 %v1549, 0.0078125
    %v1551 = vsub.f32 %v1495, %v1550
    %v1552 = vsub.f32 %v1496, %v1550
    %v1553 = vsub.f32 %v1497, %v1550
    %v1554 = vsub.f32 %v1498, %v1550
    %v1555 = vsub.f32 %v1499, %v1550
    %v1556 = vsub.f32 %v1500, %v1550
    %v1557 = vsub.f32 %v1501, %v1550
    %v1558 = vsub.f32 %v1502, %v1550
    %v1559 = vsub.f32 %v1503, %v1550
    %v1560 = vsub.f32 %v1504, %v1550
    %v1561 = vsub.f32 %v1505, %v1550
    %v1562 = vsub.f32 %v1506, %v1550
    %v1563 = vsub.f32 %v1507, %v1550
    %v1564 = vsub.f32 %v1508, %v1550
    %v1565 = vsub.f32 %v1509, %v1550
    %v1566 = vsub.f32 %v1510, %v1550
    %v1567 = vmul.f32 %v1551, %v1551
    %v1568 = vmul.f32 %v1552, %v1552
    %v1569 = vmul.f32 %v1553, %v1553
    %v1570 = vmul.f32 %v1554, %v1554
    %v1571 = vmul.f32 %v1555, %v1555
    %v1572 = vmul.f32 %v1556, %v1556
    %v1573 = vmul.f32 %v1557, %v1557
    %v1574 = vmul.f32 %v1558, %v1558
    %v1575 = vmul.f32 %v1559, %v1559
    %v1576 = vmul.f32 %v1560, %v1560
    %v1577 = vmul.f32 %v1561, %v1561
    %v1578 = vmul.f32 %v1562, %v1562
    %v1579 = vmul.f32 %v1563, %v1563
    %v1580 = vmul.f32 %v1564, %v1564
    %v1581 = vmul.f32 %v1565, %v1565
    %v1582 = vmul.f32 %v1566, %v1566
    %v1583 = vsel %vm326, %v1567, 0.0
    %v1584 = vsel %vm326, %v1568, 0.0
    %v1585 = vadd.f32 %v1583, %v1584
    %v1586 = vsel %vm326, %v1569, 0.0
    %v1587 = vadd.f32 %v1585, %v1586
    %v1588 = vsel %vm326, %v1570, 0.0
    %v1589 = vadd.f32 %v1587, %v1588
    %v1590 = vsel %vm326, %v1571, 0.0
    %v1591 = vadd.f32 %v1589, %v1590
    %v1592 = vsel %vm326, %v1572, 0.0
    %v1593 = vadd.f32 %v1591, %v1592
    %v1594 = vsel %vm326, %v1573, 0.0
    %v1595 = vadd.f32 %v1593, %v1594
    %v1596 = vsel %vm326, %v1574, 0.0
    %v1597 = vadd.f32 %v1595, %v1596
    %v1598 = vsel %vm326, %v1575, 0.0
    %v1599 = vadd.f32 %v1597, %v1598
    %v1600 = vsel %vm326, %v1576, 0.0
    %v1601 = vadd.f32 %v1599, %v1600
    %v1602 = vsel %vm326, %v1577, 0.0
    %v1603 = vadd.f32 %v1601, %v1602
    %v1604 = vsel %vm326, %v1578, 0.0
    %v1605 = vadd.f32 %v1603, %v1604
    %v1606 = vsel %vm326, %v1579, 0.0
    %v1607 = vadd.f32 %v1605, %v1606
    %v1608 = vsel %vm326, %v1580, 0.0
    %v1609 = vadd.f32 %v1607, %v1608
    %v1610 = vsel %vm326, %v1581, 0.0
    %v1611 = vadd.f32 %v1609, %v1610
    %v1612 = vsel %vm326, %v1582, 0.0
    %v1613 = vadd.f32 %v1611, %v1612
    %v1614 = vrot.slane %v1613, 4
    %v1615 = vadd.f32 %v1613, %v1614
    %v1616 = vrot.slane %v1615, 2
    %v1617 = vadd.f32 %v1615, %v1616
    %v1618 = vrot.slane %v1617, 1
    %v1619 = vadd.f32 %v1617, %v1618
    %v1620 = vmul.f32 %v1619, 0.0078125
    %v1621 = vadd.f32 %v1620, 1e-05
    %v1622 = vrsqrt.pop %v1621
    %v1623 = vmul.f32 %v1622, %v1621
    %v1624 = vmul.f32 %v1623, %v1622
    %v1625 = vmul.f32 0.5, %v1624
    %v1626 = vsub.f32 1.5, %v1625
    %v1627 = vmul.f32 %v1622, %v1626
    %vm1628 = vweird.f32 %v1621
    %vm1629 = vweird.f32 %v1622
    %vm1630 = vmor %vm1628, %vm1629
    %v1631 = vsel %vm1630, %v1622, %v1627
    %v1632 = vmul.f32 %v1631, %v1511
    %v1633 = vperm.slane %v1632, 0
    %v1634 = vmul.f32 %v1551, %v1633
    %v1635 = vmul.f32 %v1552, %v1633
    %v1636 = vmul.f32 %v1553, %v1633
    %v1637 = vmul.f32 %v1554, %v1633
    %v1638 = vmul.f32 %v1555, %v1633
    %v1639 = vmul.f32 %v1556, %v1633
    %v1640 = vmul.f32 %v1557, %v1633
    %v1641 = vmul.f32 %v1558, %v1633
    %v1642 = vmul.f32 %v1559, %v1633
    %v1643 = vmul.f32 %v1560, %v1633
    %v1644 = vmul.f32 %v1561, %v1633
    %v1645 = vmul.f32 %v1562, %v1633
    %v1646 = vmul.f32 %v1563, %v1633
    %v1647 = vmul.f32 %v1564, %v1633
    %v1648 = vmul.f32 %v1565, %v1633
    %v1649 = vmul.f32 %v1566, %v1633
    %v1650 = vperm.slane %v1512, 0
    %v1651 = vadd.f32 %v1634, %v1650
    %v1652 = vadd.f32 %v1635, %v1650
    %v1653 = vadd.f32 %v1636, %v1650
    %v1654 = vadd.f32 %v1637, %v1650
    %v1655 = vadd.f32 %v1638, %v1650
    %v1656 = vadd.f32 %v1639, %v1650
    %v1657 = vadd.f32 %v1640, %v1650
    %v1658 = vadd.f32 %v1641, %v1650
    %v1659 = vadd.f32 %v1642, %v1650
    %v1660 = vadd.f32 %v1643, %v1650
    %v1661 = vadd.f32 %v1644, %v1650
    %v1662 = vadd.f32 %v1645, %v1650
    %v1663 = vadd.f32 %v1646, %v1650
    %v1664 = vadd.f32 %v1647, %v1650
    %v1665 = vadd.f32 %v1648, %v1650
    %v1666 = vadd.f32 %v1649, %v1650
    %v1667 = vadd.f32 %v1651, %v1653
    %v1668 = vadd.f32 %v1652, %v1654
    %v1669 = vadd.f32 %v1667, %v1655
    %v1670 = vadd.f32 %v1668, %v1656
    %v1671 = vadd.f32 %v1669, %v1657
    %v1672 = vadd.f32 %v1670, %v1658
    %v1673 = vadd.f32 %v1671, %v1659
    %v1674 = vadd.f32 %v1672, %v1660
    %v1675 = vadd.f32 %v1673, %v1661
    %v1676 = vadd.f32 %v1674, %v1662
    %v1677 = vadd.f32 %v1675, %v1663
    %v1678 = vadd.f32 %v1676, %v1664
    %v1679 = vadd.f32 %v1677, %v1665
    %v1680 = vadd.f32 %v1678, %v1666
    %v1681 = vmul.f32 %v1679, 0.125
    %v1682 = vmul.f32 %v1680, 0.125
    %v1683 = vld [vmem:[%s3] sm:$0xff]
    %v1684 = vld [vmem:[%s3 + $0x8] sm:$0xff]
    %v1685 = vld [vmem:[%s8] sm:$0x3]
    %v1686 = vpack.c.bf16 %v1684, %v1683
    %vm1687 = vcmask 31744
    %v1689 = vsel %vm1687, %v1686, 0
    %vm1691 = vcmask 1041408
    %v1693 = vsel %vm1691, %v1685, 0
    %1695 = vmatpush.bf16.msra.mxu0 0
    %1696 = vmatpush.bf16.msra.mxu0 0
    %1697 = vmatpush.bf16.msra.mxu0 0
    %1698 = vmatpush.bf16.msra.mxu0 0
    %1699 = vmatpush.bf16.msra.mxu0 0
    %1700 = vmatpush.bf16.msra.mxu0 0
    %1701 = vmatpush.bf16.msra.mxu0 0
    %1702 = vmatpush.bf16.msra.mxu0 %v1693
    %1703 = vmatmul.bf16.gmra.mxu0 %v1689
    %v1704 = vpop.f32.mrf.mxu0
    %v1705 = vadd.f32 0.0, %v1704
    %v1706 = vpop.f32.mrf.mxu0
    %v1707 = vadd.f32 0.0, %v1706
    %1708 = vdwg.mxu0
    %v1709 = vld [vmem:[%s9] sm:$0xf]
    %v1710 = vld [vmem:[%s9 + $0x4] sm:$0xf]
    %v1711 = vld [vmem:[%s9 + $0x8] sm:$0xf]
    %v1712 = vld [vmem:[%s9 + $0xc] sm:$0xf]
    %v1713 = vpack.c.bf16 %v1707, %v1705
    %v1714 = vld [vmem:[%s9 + $0x10] sm:$0xf]
    %v1715 = vld [vmem:[%s9 + $0x14] sm:$0xf]
    %v1716 = vld [vmem:[%s9 + $0x18] sm:$0xf]
    %v1717 = vld [vmem:[%s9 + $0x1c] sm:$0xf]
    %v1718 = vpack.c.bf16 %v1682, %v1681
    %v1723 = vunpack.c.l.b16 %v1714
    %v1724 = vunpack.c.l.b16 %v1715
    %v1725 = vunpack.c.l.b16 %v1716
    %v1726 = vunpack.c.l.b16 %v1717
    %v1727 = vpack.c.b16 %v1724, %v1723
    %v1728 = vpack.c.b16 %v1726, %v1725
    %v1732 = vsel %vm326, %v1718, 0
    %1734 = vmatpush.bf16.msra.mxu0 0
    %1735 = vmatpush.bf16.msra.mxu0 0
    %1736 = vmatpush.bf16.msra.mxu0 0
    %1737 = vmatpush.bf16.msra.mxu0 0
    %1738 = vmatpush.bf16.msra.mxu0 0
    %1739 = vmatpush.bf16.msra.mxu0 0
    %1740 = vmatpush.bf16.msra.mxu0 %v1728
    %1741 = vmatpush.bf16.msra.mxu0 %v1727
    %1742 = vmatmul.bf16.gmra.mxu0 %v1732
    %v1743 = vpop.f32.mrf.mxu0
    %v1744 = vadd.f32 0.0, %v1743
    %v1745 = vpop.f32.mrf.mxu0
    %v1746 = vadd.f32 0.0, %v1745
    %1747 = vdwg.mxu0
    %v1752 = vunpack.c.l.b16 %v1709
    %v1753 = vunpack.c.l.b16 %v1710
    %v1754 = vunpack.c.l.b16 %v1711
    %v1755 = vunpack.c.l.b16 %v1712
    %v1756 = vpack.c.b16 %v1753, %v1752
    %v1757 = vpack.c.b16 %v1755, %v1754
    %v1761 = vsel %vm326, %v1713, 0
    %1763 = vmatpush.bf16.msra.mxu0 0
    %1764 = vmatpush.bf16.msra.mxu0 0
    %1765 = vmatpush.bf16.msra.mxu0 0
    %1766 = vmatpush.bf16.msra.mxu0 0
    %1767 = vmatpush.bf16.msra.mxu0 0
    %1768 = vmatpush.bf16.msra.mxu0 0
    %1769 = vmatpush.bf16.msra.mxu0 %v1757
    %1770 = vmatpush.bf16.msra.mxu0 %v1756
    %1771 = vmatmul.bf16.gmra.mxu0 %v1761
    %v1772 = vpop.f32.mrf.mxu0
    %v1773 = vadd.f32 %v1744, %v1772
    %v1774 = vpop.f32.mrf.mxu0
    %v1775 = vadd.f32 %v1746, %v1774
    %1776 = vdwg.mxu0
    %v1777 = vld [vmem:[%s2] sm:$0xf]
    %v1778 = vld [vmem:[%s2 + $0x4] sm:$0xf]
    %v1779 = vpack.c.bf16 %v1775, %v1773
    %v1782 = vunpack.c.l.b16 %v1777
    %v1783 = vunpack.c.l.b16 %v1778
    %v1784 = vpack.c.b16 %v1783, %v1782
    %vm1785 = vcmask 130048
    %v1787 = vsel %vm1785, %v1784, 0
    %1789 = vmatpush.bf16.msra.mxu0 0
    %1790 = vmatpush.bf16.msra.mxu0 0
    %1791 = vmatpush.bf16.msra.mxu0 0
    %1792 = vmatpush.bf16.msra.mxu0 0
    %1793 = vmatpush.bf16.msra.mxu0 0
    %1794 = vmatpush.bf16.msra.mxu0 0
    %1795 = vmatpush.bf16.msra.mxu0 0
    %1796 = vmatpush.bf16.msra.mxu0 %v1779
    %1797 = vmatmul.bf16.gmra.mxu0 %v1787
    %v1798 = vpop.f32.mrf.mxu0
    %v1799 = vadd.f32 0.0, %v1798
    %v1800 = vpop.f32.mrf.mxu0
    %v1801 = vadd.f32 0.0, %v1800
    %1802 = vdwg.mxu0
    %s1803 = sld [smem:[#allocation2 + $0x3]]
    %s1804 = sadd.f32 %s1803, 1.0
    %v1805 = vstv %s1804
    %v1806 = vmul.f32 %v1805, %v1773
    %v1807 = vmul.f32 %v1805, %v1775
    %v1808 = vadd.f32 %v1806, %v1799
    %v1809 = vadd.f32 %v1807, %v1801
    %s1810 = scalar_lea.vmem %s5, 32
    %v1811 = vld [vmem:[%s1810] sm:$0xf]
    %v1812 = vld [vmem:[%s1810 + $0x4] sm:$0xf]
    %v1813 = vld [vmem:[%s1810 + $0x8] sm:$0xf]
    %v1814 = vld [vmem:[%s1810 + $0xc] sm:$0xf]
    %v1815 = vpack.c.bf16 %v1809, %v1808
    %v1820 = vunpack.c.l.b16 %v1811
    %v1821 = vunpack.c.l.b16 %v1812
    %v1822 = vunpack.c.l.b16 %v1813
    %v1823 = vunpack.c.l.b16 %v1814
    %v1824 = vpack.c.b16 %v1821, %v1820
    %v1825 = vpack.c.b16 %v1823, %v1822
    %v1829 = vsel %vm326, %v1815, 0
    %1831 = vmatpush.bf16.msra.mxu0 0
    %1832 = vmatpush.bf16.msra.mxu0 0
    %1833 = vmatpush.bf16.msra.mxu0 0
    %1834 = vmatpush.bf16.msra.mxu0 0
    %1835 = vmatpush.bf16.msra.mxu0 0
    %1836 = vmatpush.bf16.msra.mxu0 0
    %1837 = vmatpush.bf16.msra.mxu0 %v1825
    %1838 = vmatpush.bf16.msra.mxu0 %v1824
    %1839 = vmatmul.bf16.gmra.mxu0 %v1829
    %v1840 = vpop.f32.mrf.mxu0
    %v1841 = vadd.f32 0.0, %v1840
    %v1842 = vpop.f32.mrf.mxu0
    %v1843 = vadd.f32 0.0, %v1842
    %1844 = vdwg.mxu0
    %v1845 = vld [vmem:[%s7 + $0x8] sm:$0x1]
    %v1846 = vld [vmem:[%s7 + $0x9] sm:$0x1]
    %v1847 = vsel %vm326, %v1841, 0.0
    %v1848 = vsel %vm326, %v1843, 0.0
    %v1849 = vadd.f32 %v1847, %v1848
    %v1850 = vrot.slane %v1849, 4
    %v1851 = vadd.f32 %v1849, %v1850
    %v1852 = vrot.slane %v1851, 2
    %v1853 = vadd.f32 %v1851, %v1852
    %v1854 = vrot.slane %v1853, 1
    %v1855 = vadd.f32 %v1853, %v1854
    %v1856 = vmul.f32 %v1855, 0.0625
    %v1857 = vsub.f32 %v1841, %v1856
    %v1858 = vsub.f32 %v1843, %v1856
    %v1859 = vmul.f32 %v1857, %v1857
    %v1860 = vmul.f32 %v1858, %v1858
    %v1861 = vsel %vm326, %v1859, 0.0
    %v1862 = vsel %vm326, %v1860, 0.0
    %v1863 = vadd.f32 %v1861, %v1862
    %v1864 = vrot.slane %v1863, 4
    %v1865 = vadd.f32 %v1863, %v1864
    %v1866 = vrot.slane %v1865, 2
    %v1867 = vadd.f32 %v1865, %v1866
    %v1868 = vrot.slane %v1867, 1
    %v1869 = vadd.f32 %v1867, %v1868
    %v1870 = vmul.f32 %v1869, 0.0625
    %v1871 = vadd.f32 %v1870, 1e-05
    %v1872 = vrsqrt.pop %v1871
    %v1873 = vmul.f32 %v1872, %v1871
    %v1874 = vmul.f32 %v1873, %v1872
    %v1875 = vmul.f32 0.5, %v1874
    %v1876 = vsub.f32 1.5, %v1875
    %v1877 = vmul.f32 %v1872, %v1876
    %vm1878 = vweird.f32 %v1871
    %vm1879 = vweird.f32 %v1872
    %vm1880 = vmor %vm1878, %vm1879
    %v1881 = vsel %vm1880, %v1872, %v1877
    %v1882 = vmul.f32 %v1881, %v1845
    %v1883 = vperm.slane %v1882, 0
    %v1884 = vmul.f32 %v1857, %v1883
    %v1885 = vmul.f32 %v1858, %v1883
    %v1886 = vperm.slane %v1846, 0
    %v1887 = vadd.f32 %v1884, %v1886
    %v1888 = vadd.f32 %v1885, %v1886
    %v1889 = vmax.f32 %v1887, 0.0
    %v1890 = vmax.f32 %v1888, 0.0
    %v1891 = vpack.c.bf16 %v1890, %v1889
    %1892 = vmatpush.bf16.msra.mxu0 0
    %1893 = vmatpush.bf16.msra.mxu0 0
    %1894 = vmatpush.bf16.msra.mxu0 0
    %1895 = vmatpush.bf16.msra.mxu0 0
    %1896 = vmatpush.bf16.msra.mxu0 0
    %1897 = vmatpush.bf16.msra.mxu0 0
    %1898 = vmatpush.bf16.msra.mxu0 0
    %1899 = vmatpush.bf16.msra.mxu0 %v1891
    %1900 = vmatmul.bf16.gmra.mxu0 %v1787
    %v1901 = vpop.f32.mrf.mxu0
    %v1902 = vadd.f32 0.0, %v1901
    %v1903 = vpop.f32.mrf.mxu0
    %v1904 = vadd.f32 0.0, %v1903
    %1905 = vdwg.mxu0
    %s1906 = sld [smem:[#allocation2 + $0x4]]
    %s1907 = sadd.f32 %s1906, 1.0
    %v1908 = vstv %s1907
    %v1909 = vmul.f32 %v1908, %v1889
    %v1910 = vmul.f32 %v1908, %v1890
    %v1911 = vadd.f32 %v1909, %v1902
    %v1912 = vadd.f32 %v1910, %v1904
    %s1913 = scalar_lea.vmem %s5, 48
    %v1914 = vld [vmem:[%s1913] sm:$0xf]
    %v1915 = vld [vmem:[%s1913 + $0x4] sm:$0xf]
    %v1916 = vld [vmem:[%s1913 + $0x8] sm:$0xf]
    %v1917 = vld [vmem:[%s1913 + $0xc] sm:$0xf]
    %v1918 = vpack.c.bf16 %v1912, %v1911
    %v1923 = vunpack.c.l.b16 %v1914
    %v1924 = vunpack.c.l.b16 %v1915
    %v1925 = vunpack.c.l.b16 %v1916
    %v1926 = vunpack.c.l.b16 %v1917
    %v1927 = vpack.c.b16 %v1924, %v1923
    %v1928 = vpack.c.b16 %v1926, %v1925
    %v1932 = vsel %vm326, %v1918, 0
    %1934 = vmatpush.bf16.msra.mxu0 0
    %1935 = vmatpush.bf16.msra.mxu0 0
    %1936 = vmatpush.bf16.msra.mxu0 0
    %1937 = vmatpush.bf16.msra.mxu0 0
    %1938 = vmatpush.bf16.msra.mxu0 0
    %1939 = vmatpush.bf16.msra.mxu0 0
    %1940 = vmatpush.bf16.msra.mxu0 %v1928
    %1941 = vmatpush.bf16.msra.mxu0 %v1927
    %1942 = vmatmul.bf16.gmra.mxu0 %v1932
    %v1943 = vpop.f32.mrf.mxu0
    %v1944 = vadd.f32 0.0, %v1943
    %v1945 = vpop.f32.mrf.mxu0
    %v1946 = vadd.f32 0.0, %v1945
    %1947 = vdwg.mxu0
    %v1948 = vld [vmem:[%s7 + $0xa] sm:$0x1]
    %v1949 = vld [vmem:[%s7 + $0xb] sm:$0x1]
    %v1950 = vsel %vm326, %v1944, 0.0
    %v1951 = vsel %vm326, %v1946, 0.0
    %v1952 = vadd.f32 %v1950, %v1951
    %v1953 = vrot.slane %v1952, 4
    %v1954 = vadd.f32 %v1952, %v1953
    %v1955 = vrot.slane %v1954, 2
    %v1956 = vadd.f32 %v1954, %v1955
    %v1957 = vrot.slane %v1956, 1
    %v1958 = vadd.f32 %v1956, %v1957
    %v1959 = vmul.f32 %v1958, 0.0625
    %v1960 = vsub.f32 %v1944, %v1959
    %v1961 = vsub.f32 %v1946, %v1959
    %v1962 = vmul.f32 %v1960, %v1960
    %v1963 = vmul.f32 %v1961, %v1961
    %v1964 = vsel %vm326, %v1962, 0.0
    %v1965 = vsel %vm326, %v1963, 0.0
    %v1966 = vadd.f32 %v1964, %v1965
    %v1967 = vrot.slane %v1966, 4
    %v1968 = vadd.f32 %v1966, %v1967
    %v1969 = vrot.slane %v1968, 2
    %v1970 = vadd.f32 %v1968, %v1969
    %v1971 = vrot.slane %v1970, 1
    %v1972 = vadd.f32 %v1970, %v1971
    %v1973 = vmul.f32 %v1972, 0.0625
    %v1974 = vadd.f32 %v1973, 1e-05
    %v1975 = vrsqrt.pop %v1974
    %v1976 = vmul.f32 %v1975, %v1974
    %v1977 = vmul.f32 %v1976, %v1975
    %v1978 = vmul.f32 0.5, %v1977
    %v1979 = vsub.f32 1.5, %v1978
    %v1980 = vmul.f32 %v1975, %v1979
    %vm1981 = vweird.f32 %v1974
    %vm1982 = vweird.f32 %v1975
    %vm1983 = vmor %vm1981, %vm1982
    %v1984 = vsel %vm1983, %v1975, %v1980
    %v1985 = vmul.f32 %v1984, %v1948
    %v1986 = vperm.slane %v1985, 0
    %v1987 = vmul.f32 %v1960, %v1986
    %v1988 = vmul.f32 %v1961, %v1986
    %v1989 = vperm.slane %v1949, 0
    %v1990 = vadd.f32 %v1987, %v1989
    %v1991 = vadd.f32 %v1988, %v1989
    %v1992 = vmax.f32 %v1990, 0.0
    %v1993 = vmax.f32 %v1991, 0.0
    %v1994 = vsel %vm326, %v1992, 0.0
    %v1995 = vsel %vm326, %v1993, 0.0
    %v1996 = vadd.f32 %v1994, %v1995
    %v1997 = vrot.slane %v1996, 4
    %v1998 = vadd.f32 %v1996, %v1997
    %v1999 = vrot.slane %v1998, 2
    %v2000 = vadd.f32 %v1998, %v1999
    %v2001 = vrot.slane %v2000, 1
    %v2002 = vadd.f32 %v2000, %v2001
    %v2003 = vmul.f32 %v2002, 0.0625
    %v2004 = vld [vmem:[%s10] sm:$0xff]
    %v2005 = vmul.f32 %v2004, %v2003
    %v2006 = vsel %vm326, %v2005, 0.0
    %2007 = vadd.xlane.f32.xlu0 %v2006
    %v2008 = vpop.xlane.xlu0 %2007
    %vm2009 = vcmask 7168
    %2010 = vst.msk [vmem:[%s11] sm:$0xff] %vm2009, %v2008
    // Predicated region
    $region50: #{signnet_gnn_s_forward.1} parent=1 // pred_check
      _
    $region51: #{signnet_gnn_s_forward.1} parent=1 // pred_check_branch
      %2012 = sbr.rel (0) target = $region53
    $region52: #{signnet_gnn_s_forward.1} parent=1 // pred_region
      _
    $region53: #{signnet_gnn_s_forward.1} parent=1 // pred_fallthru
      _
    // Predicated region
    $region54: #{signnet_gnn_s_forward.1} parent=1 // pred_check
      _
    $region55: #{signnet_gnn_s_forward.1} parent=1 // pred_check_branch
      %2014 = sbr.rel (0) target = $region57
    $region56: #{signnet_gnn_s_forward.1} parent=1 // pred_region
      _
    $region57: #{signnet_gnn_s_forward.1} parent=1 // pred_fallthru
      _
    %2015 = vsyncpa [#allocation3], 1

</llo_original>
